<compile_context>
chip_gen: v5e
topology: v5e:2x2
jax: 0.10.0
libtpu: 0.0.40
codegen_flags: <defaults>
</compile_context>

<pallas_src>
import functools

import jax
import jax.numpy as jnp
from jax import lax
from jax.experimental import pallas as pl
from jax.experimental.pallas import tpu as pltpu


# ----------------------------- Pallas kernel ------------------------------- #
def _trf_nll_kernel(x_ref, w1_ref, b1_ref, w_ref, b_ref, tgt_ref, mask_ref,
                    nll_ref, h_scr, m_scr, s_scr, t_scr):
    """Grid = (token tiles, vocab tiles); vocab axis is the reduction axis.

    x_ref    : (TM, F)  bf16   raw per-token features for this token tile
    w1_ref   : (F, H)   bf16   encoder weight (resident)
    b1_ref   : (1, H)   f32    encoder bias
    w_ref    : (H, TV)  bf16   vocab-projection tile (streamed over vocab axis)
    b_ref    : (1, TV)  f32    vocab bias tile
    tgt_ref  : (TM, 1)  int32  target token ids
    mask_ref : (TM, 1)  f32    1.0 valid token / 0.0 padding
    nll_ref  : (TM, 1)  f32    per-token masked NLL (written at last vocab step)
    h_scr    : (TM, H)  bf16   cached encoder output (computed at vocab step 0)
    m_scr    : (TM, 1)  f32    running max   (online LSE)
    s_scr    : (TM, 1)  f32    running sum   (online LSE)
    t_scr    : (TM, 1)  f32    accumulated target logit
    """
    v = pl.program_id(1)
    nv = pl.num_programs(1)
    tv = w_ref.shape[-1]

    @pl.when(v == 0)
    def _encode_and_init():
        # Fused token encoder: h = tanh(x @ W1 + b1), kept in VMEM as bf16.
        h = jnp.tanh(
            jnp.dot(x_ref[...], w1_ref[...],
                    preferred_element_type=jnp.float32) + b1_ref[...])
        h_scr[...] = h.astype(h_scr.dtype)
        m_scr[...] = jnp.full_like(m_scr, -jnp.inf)
        s_scr[...] = jnp.zeros_like(s_scr)
        t_scr[...] = jnp.zeros_like(t_scr)

    # Vocab-tile logits on the MXU: bf16 x bf16 -> f32 accumulate.
    logits = jnp.dot(h_scr[...], w_ref[...],
                     preferred_element_type=jnp.float32) + b_ref[...]

    # Online (flash-style) log-sum-exp update over vocab tiles.
    m_prev = m_scr[...]
    m_new = jnp.maximum(m_prev, jnp.max(logits, axis=-1, keepdims=True))
    s_scr[...] = (s_scr[...] * jnp.exp(m_prev - m_new)
                  + jnp.sum(jnp.exp(logits - m_new), axis=-1, keepdims=True))
    m_scr[...] = m_new

    # Target-logit gather for the columns owned by this vocab tile.
    col = lax.broadcasted_iota(jnp.int32, logits.shape, 1) + v * tv
    t_scr[...] += jnp.sum(jnp.where(col == tgt_ref[...], logits, 0.0),
                          axis=-1, keepdims=True)

    @pl.when(v == nv - 1)
    def _finalize():
        lse = m_scr[...] + jnp.log(s_scr[...])
        nll_ref[...] = (lse - t_scr[...]) * mask_ref[...]


def _run_trf_nll(x2d, w1, b1, w_out, b_out, tgt2d, mask2d, *,
                 tm=128, tv=256, vmem_limit_bytes=None):
    """Launch the fused encoder + vocab-NLL kernel over (token, vocab) tiles."""
    n, fdim = x2d.shape
    hdim = w1.shape[1]
    vdim = w_out.shape[1]
    assert n % tm == 0, (n, tm)
    assert vdim % tv == 0, (vdim, tv)

    grid = (n // tm, vdim // tv)

    nll = pl.pallas_call(
        _trf_nll_kernel,
        out_shape=jax.ShapeDtypeStruct((n, 1), jnp.float32),
        grid_spec=pltpu.PrefetchScalarGridSpec(
            num_scalar_prefetch=0,
            grid=grid,
            in_specs=[
                pl.BlockSpec((tm, fdim), lambda i, j: (i, 0)),   # x tile
                pl.BlockSpec((fdim, hdim), lambda i, j: (0, 0)), # W1 (resident)
                pl.BlockSpec((1, hdim), lambda i, j: (0, 0)),    # b1
                pl.BlockSpec((hdim, tv), lambda i, j: (0, j)),   # W_out tile
                pl.BlockSpec((1, tv), lambda i, j: (0, j)),      # b_out tile
                pl.BlockSpec((tm, 1), lambda i, j: (i, 0)),      # targets
                pl.BlockSpec((tm, 1), lambda i, j: (i, 0)),      # mask
            ],
            out_specs=pl.BlockSpec((tm, 1), lambda i, j: (i, 0)),
            scratch_shapes=[
                pltpu.VMEM((tm, hdim), jnp.bfloat16),   # cached encoder output
                pltpu.VMEM((tm, 1), jnp.float32),       # running max
                pltpu.VMEM((tm, 1), jnp.float32),       # running sum
                pltpu.VMEM((tm, 1), jnp.float32),       # target logit acc
            ],
        ),
        compiler_params=pltpu.CompilerParams(
            dimension_semantics=("parallel", "arbitrary"),
            vmem_limit_bytes=vmem_limit_bytes),
    )(x2d, w1, b1, w_out, b_out, tgt2d, mask2d)
    return nll


# ------------------------- TRFLMTrainer forward ----------------------------- #
def trf_lm_trainer_forward(params, inputs, in_lens, targets, target_lens,
                           *, tm=128, tv=256):
    """Mirror of TRFLMTrainer.forward -> (loss, batch_size, metrics).

    inputs  : (B, T, F) float32  per-token features
    in_lens : (B,)      int32    valid lengths
    targets : (B, T)    int32    target token ids
    """
    del target_lens  # only in_lens gates the loss in the reference forward
    b, t, fdim = inputs.shape
    vocab = params["w_out"].shape[1]
    n = b * t
    n_pad = ((n + tm - 1) // tm) * tm

    x2d = inputs.reshape(n, fdim)
    pos = jnp.arange(t, dtype=jnp.int32)[None, :]
    mask = (pos < in_lens[:, None]).astype(jnp.float32).reshape(n, 1)
    tgt2d = jnp.clip(targets.reshape(n, 1), 0, vocab - 1).astype(jnp.int32)

    if n_pad != n:  # pad tokens up to a full tile (masked out)
        pad = n_pad - n
        x2d = jnp.pad(x2d, ((0, pad), (0, 0)))
        mask = jnp.pad(mask, ((0, pad), (0, 0)))
        tgt2d = jnp.pad(tgt2d, ((0, pad), (0, 0)))

    tv_eff = min(tv, vocab)
    assert vocab % tv_eff == 0, (vocab, tv_eff)

    nll = _run_trf_nll(
        x2d.astype(jnp.bfloat16),
        params["w1"].astype(jnp.bfloat16),
        params["b1"].reshape(1, -1).astype(jnp.float32),
        params["w_out"].astype(jnp.bfloat16),
        params["b_out"].reshape(1, -1).astype(jnp.float32),
        tgt2d, mask, tm=tm, tv=tv_eff)

    nll_bt = nll[:n, 0].reshape(b, t)
    energy = jnp.sum(nll_bt, axis=1)                   # per-sequence energy (B,)
    total_tokens = jnp.maximum(jnp.sum(mask), 1.0)
    loss = jnp.sum(nll_bt) / total_tokens              # mean masked NLL
    # TODO(synk): the exact TRFLM energy network / cal_loss (NCE-style) math is
    # not available; this uses the masked-NLL formulation as the stand-in.
    metrics = {"energy": energy, "ppl": jnp.exp(loss)}
    return loss, b, metrics


# --------------------------------- main ------------------------------------ #
if __name__ == "__main__":
    B, T, F, H, V = 4, 64, 64, 128, 512     # 2 token tiles x 2 vocab tiles

    key = jax.random.PRNGKey(0)
    k_in, k_tgt, k_w1, k_b1, k_wo, k_bo = jax.random.split(key, 6)

    inputs = jax.random.normal(k_in, (B, T, F), dtype=jnp.float32)
    in_lens = jnp.array([T, 50, 17, 1], dtype=jnp.int32)
    targets = jax.random.randint(k_tgt, (B, T), 0, V, dtype=jnp.int32)
    target_lens = in_lens

    params = {
        "w1": 0.1 * jax.random.normal(k_w1, (F, H), dtype=jnp.float32),
        "b1": 0.01 * jax.random.normal(k_b1, (H,), dtype=jnp.float32),
        "w_out": 0.1 * jax.random.normal(k_wo, (H, V), dtype=jnp.float32),
        "b_out": 0.01 * jax.random.normal(k_bo, (V,), dtype=jnp.float32),
    }

    fwd = jax.jit(functools.partial(trf_lm_trainer_forward, tm=128, tv=256))
    loss, batch_size, metrics = fwd(params, inputs, in_lens, targets, target_lens)
    jax.block_until_ready((loss, metrics["energy"], metrics["ppl"]))

    # Pure-JAX reference with the same bf16 matmul inputs / f32 accumulation.
    x_bf = inputs.reshape(B * T, F).astype(jnp.bfloat16)
    h_ref = jnp.tanh(
        jnp.dot(x_bf, params["w1"].astype(jnp.bfloat16),
                preferred_element_type=jnp.float32) + params["b1"])
    logits_ref = jnp.dot(h_ref.astype(jnp.bfloat16),
                         params["w_out"].astype(jnp.bfloat16),
                         preferred_element_type=jnp.float32) + params["b_out"]
    logp_ref = jax.nn.log_softmax(logits_ref, axis=-1)
    nll_ref = -jnp.take_along_axis(
        logp_ref, targets.reshape(-1, 1), axis=-1)[:, 0].reshape(B, T)
    mask_ref = (jnp.arange(T)[None, :] < in_lens[:, None]).astype(jnp.float32)
    loss_ref = jnp.sum(nll_ref * mask_ref) / jnp.sum(mask_ref)
    energy_ref = jnp.sum(nll_ref * mask_ref, axis=1)

    assert jnp.allclose(loss, loss_ref, rtol=5e-3, atol=5e-3), (loss, loss_ref)
    assert jnp.allclose(metrics["energy"], energy_ref, rtol=5e-3, atol=5e-2), (
        metrics["energy"], energy_ref)

    print("KERNEL_OK")
</pallas_src>

<mosaic_0001>
module attributes {stable_mosaic.version = 11 : i64} {
  func.func @_trf_nll_kernel(%arg0: i32, %arg1: i32, %arg2: memref<128x64xbf16, #tpu.memory_space<vmem>>, %arg3: memref<64x128xbf16, #tpu.memory_space<vmem>>, %arg4: memref<1x128xf32, #tpu.memory_space<vmem>>, %arg5: memref<128x256xbf16, #tpu.memory_space<vmem>>, %arg6: memref<1x256xf32, #tpu.memory_space<vmem>>, %arg7: memref<128x1xi32, #tpu.memory_space<vmem>>, %arg8: memref<128x1xf32, #tpu.memory_space<vmem>>, %arg9: memref<128x1xf32, #tpu.memory_space<vmem>>, %arg10: memref<128x128xbf16, #tpu.memory_space<vmem>>, %arg11: memref<128x1xf32, #tpu.memory_space<vmem>>, %arg12: memref<128x1xf32, #tpu.memory_space<vmem>>, %arg13: memref<128x1xf32, #tpu.memory_space<vmem>>) attributes {dimension_semantics = [#tpu.dimension_semantics<parallel>, #tpu.dimension_semantics<arbitrary>], iteration_bounds = array<i64: 2, 2>, scalar_prefetch = 0 : i64, scratch_operands = 4 : i64, tpu.core_type = #tpu.core_type<tc>, window_params = [{transform_indices = @transform_0, window_bounds = array<i64: 128, 64>}, {pipeline_mode = #tpu.pipeline_mode<synchronous>, transform_indices = @transform_1, window_bounds = array<i64: 64, 128>}, {pipeline_mode = #tpu.pipeline_mode<synchronous>, transform_indices = @transform_2, window_bounds = array<i64: 1, 128>}, {transform_indices = @transform_3, window_bounds = array<i64: 128, 256>}, {transform_indices = @transform_4, window_bounds = array<i64: 1, 256>}, {transform_indices = @transform_5, window_bounds = array<i64: 128, 1>}, {transform_indices = @transform_6, window_bounds = array<i64: 128, 1>}, {transform_indices = @transform_7, window_bounds = array<i64: 128, 1>}]} {
    %c0_i32 = arith.constant 0 : i32
    %0 = arith.cmpi eq, %arg1, %c0_i32 : i32
    %1 = arith.extui %0 : i1 to i32
    %c0_i32_0 = arith.constant 0 : i32
    %2 = arith.cmpi ne, %1, %c0_i32_0 : i32
    scf.if %2 {
      %c0_25 = arith.constant 0 : index
      %c0_26 = arith.constant 0 : index
      %42 = vector.load %arg2[%c0_25, %c0_26] : memref<128x64xbf16, #tpu.memory_space<vmem>>, vector<128x64xbf16>
      %c0_27 = arith.constant 0 : index
      %c0_28 = arith.constant 0 : index
      %43 = vector.load %arg3[%c0_27, %c0_28] : memref<64x128xbf16, #tpu.memory_space<vmem>>, vector<64x128xbf16>
      %cst_29 = arith.constant dense<0.000000e+00> : vector<128x128xf32>
      %44 = tpu.matmul %42, %43, %cst_29 {dimension_numbers = #tpu.dot_dimension_numbers<[1], [0], [0], [1], [0, 0, 1, 1], [], []>} : vector<128x64xbf16>, vector<64x128xbf16>, vector<128x128xf32> -> vector<128x128xf32>
      %c0_30 = arith.constant 0 : index
      %c0_31 = arith.constant 0 : index
      %45 = vector.load %arg4[%c0_30, %c0_31] : memref<1x128xf32, #tpu.memory_space<vmem>>, vector<1x128xf32>
      %46 = vector.broadcast %45 : vector<1x128xf32> to vector<128x128xf32>
      %47 = arith.addf %44, %46 : vector<128x128xf32>
      %48 = math.tanh %47 : vector<128x128xf32>
      %49 = arith.truncf %48 : vector<128x128xf32> to vector<128x128xbf16>
      %c0_32 = arith.constant 0 : index
      %c0_33 = arith.constant 0 : index
      %50 = vector.load %arg10[%c0_32, %c0_33] : memref<128x128xbf16, #tpu.memory_space<vmem>>, vector<128x128xbf16>
      tpu.vector_store %arg10[%c0_32, %c0_33], %49 {strides = array<i32>} : memref<128x128xbf16, #tpu.memory_space<vmem>>, vector<128x128xbf16>,
      %cst_34 = arith.constant 0xFF800000 : f32
      %51 = vector.broadcast %cst_34 : f32 to vector<128x1xf32>
      %c0_35 = arith.constant 0 : index
      %c0_36 = arith.constant 0 : index
      %52 = vector.load %arg11[%c0_35, %c0_36] : memref<128x1xf32, #tpu.memory_space<vmem>>, vector<128x1xf32>
      tpu.vector_store %arg11[%c0_35, %c0_36], %51 {strides = array<i32>} : memref<128x1xf32, #tpu.memory_space<vmem>>, vector<128x1xf32>,
      %cst_37 = arith.constant 0.000000e+00 : f32
      %53 = vector.broadcast %cst_37 : f32 to vector<128x1xf32>
      %c0_38 = arith.constant 0 : index
      %c0_39 = arith.constant 0 : index
      %54 = vector.load %arg12[%c0_38, %c0_39] : memref<128x1xf32, #tpu.memory_space<vmem>>, vector<128x1xf32>
      tpu.vector_store %arg12[%c0_38, %c0_39], %53 {strides = array<i32>} : memref<128x1xf32, #tpu.memory_space<vmem>>, vector<128x1xf32>,
      %cst_40 = arith.constant 0.000000e+00 : f32
      %55 = vector.broadcast %cst_40 : f32 to vector<128x1xf32>
      %c0_41 = arith.constant 0 : index
      %c0_42 = arith.constant 0 : index
      %56 = vector.load %arg13[%c0_41, %c0_42] : memref<128x1xf32, #tpu.memory_space<vmem>>, vector<128x1xf32>
      tpu.vector_store %arg13[%c0_41, %c0_42], %55 {strides = array<i32>} : memref<128x1xf32, #tpu.memory_space<vmem>>, vector<128x1xf32>,
    } else {
    }
    %c0 = arith.constant 0 : index
    %c0_1 = arith.constant 0 : index
    %3 = vector.load %arg10[%c0, %c0_1] : memref<128x128xbf16, #tpu.memory_space<vmem>>, vector<128x128xbf16>
    %c0_2 = arith.constant 0 : index
    %c0_3 = arith.constant 0 : index
    %4 = vector.load %arg5[%c0_2, %c0_3] : memref<128x256xbf16, #tpu.memory_space<vmem>>, vector<128x256xbf16>
    %cst = arith.constant dense<0.000000e+00> : vector<128x256xf32>
    %5 = tpu.matmul %3, %4, %cst {dimension_numbers = #tpu.dot_dimension_numbers<[1], [0], [0], [1], [0, 0, 1, 1], [], []>} : vector<128x128xbf16>, vector<128x256xbf16>, vector<128x256xf32> -> vector<128x256xf32>
    %c0_4 = arith.constant 0 : index
    %c0_5 = arith.constant 0 : index
    %6 = vector.load %arg6[%c0_4, %c0_5] : memref<1x256xf32, #tpu.memory_space<vmem>>, vector<1x256xf32>
    %7 = vector.broadcast %6 : vector<1x256xf32> to vector<128x256xf32>
    %8 = arith.addf %5, %7 : vector<128x256xf32>
    %c0_6 = arith.constant 0 : index
    %c0_7 = arith.constant 0 : index
    %9 = vector.load %arg11[%c0_6, %c0_7] : memref<128x1xf32, #tpu.memory_space<vmem>>, vector<128x1xf32>
    %cst_8 = arith.constant dense<0xFF800000> : vector<128xf32>
    %10 = vector.multi_reduction <maximumf>, %8, %cst_8 [1] : vector<128x256xf32> to vector<128xf32>
    %11 = vector.shape_cast %10 : vector<128xf32> to vector<128x1xf32>
    %12 = arith.maximumf %9, %11 : vector<128x1xf32>
    %c0_9 = arith.constant 0 : index
    %c0_10 = arith.constant 0 : index
    %13 = vector.load %arg12[%c0_9, %c0_10] : memref<128x1xf32, #tpu.memory_space<vmem>>, vector<128x1xf32>
    %14 = arith.subf %9, %12 : vector<128x1xf32>
    %15 = math.exp %14 : vector<128x1xf32>
    %16 = arith.mulf %13, %15 : vector<128x1xf32>
    %17 = vector.broadcast %12 : vector<128x1xf32> to vector<128x256xf32>
    %18 = arith.subf %8, %17 : vector<128x256xf32>
    %19 = math.exp %18 : vector<128x256xf32>
    %cst_11 = arith.constant dense<0.000000e+00> : vector<128xf32>
    %20 = vector.multi_reduction <add>, %19, %cst_11 [1] : vector<128x256xf32> to vector<128xf32>
    %21 = vector.shape_cast %20 : vector<128xf32> to vector<128x1xf32>
    %22 = arith.addf %16, %21 : vector<128x1xf32>
    %c0_12 = arith.constant 0 : index
    %c0_13 = arith.constant 0 : index
    %23 = vector.load %arg12[%c0_12, %c0_13] : memref<128x1xf32, #tpu.memory_space<vmem>>, vector<128x1xf32>
    tpu.vector_store %arg12[%c0_12, %c0_13], %22 {strides = array<i32>} : memref<128x1xf32, #tpu.memory_space<vmem>>, vector<128x1xf32>,
    %c0_14 = arith.constant 0 : index
    %c0_15 = arith.constant 0 : index
    %24 = vector.load %arg11[%c0_14, %c0_15] : memref<128x1xf32, #tpu.memory_space<vmem>>, vector<128x1xf32>
    tpu.vector_store %arg11[%c0_14, %c0_15], %12 {strides = array<i32>} : memref<128x1xf32, #tpu.memory_space<vmem>>, vector<128x1xf32>,
    %25 = tpu.iota {dimensions = array<i32: 1>} : vector<128x256xi32>
    %c256_i32 = arith.constant 256 : i32
    %26 = arith.muli %arg1, %c256_i32 : i32
    %27 = vector.broadcast %26 : i32 to vector<128x256xi32>
    %28 = arith.addi %25, %27 : vector<128x256xi32>
    %c0_16 = arith.constant 0 : index
    %c0_17 = arith.constant 0 : index
    %29 = vector.load %arg13[%c0_16, %c0_17] : memref<128x1xf32, #tpu.memory_space<vmem>>, vector<128x1xf32>
    %c0_18 = arith.constant 0 : index
    %c0_19 = arith.constant 0 : index
    %30 = vector.load %arg7[%c0_18, %c0_19] : memref<128x1xi32, #tpu.memory_space<vmem>>, vector<128x1xi32>
    %31 = vector.broadcast %30 : vector<128x1xi32> to vector<128x256xi32>
    %32 = arith.cmpi eq, %28, %31 : vector<128x256xi32>
    %cst_20 = arith.constant 0.000000e+00 : f32
    %33 = vector.broadcast %cst_20 : f32 to vector<128x256xf32>
    %34 = arith.select %32, %8, %33 : vector<128x256xi1>, vector<128x256xf32>
    %cst_21 = arith.constant dense<0.000000e+00> : vector<128xf32>
    %35 = vector.multi_reduction <add>, %34, %cst_21 [1] : vector<128x256xf32> to vector<128xf32>
    %36 = vector.shape_cast %35 : vector<128xf32> to vector<128x1xf32>
    %37 = arith.addf %29, %36 : vector<128x1xf32>
    %c0_22 = arith.constant 0 : index
    %c0_23 = arith.constant 0 : index
    %38 = vector.load %arg13[%c0_22, %c0_23] : memref<128x1xf32, #tpu.memory_space<vmem>>, vector<128x1xf32>
    tpu.vector_store %arg13[%c0_22, %c0_23], %37 {strides = array<i32>} : memref<128x1xf32, #tpu.memory_space<vmem>>, vector<128x1xf32>,
    %c1_i32 = arith.constant 1 : i32
    %39 = arith.cmpi eq, %arg1, %c1_i32 : i32
    %40 = arith.extui %39 : i1 to i32
    %c0_i32_24 = arith.constant 0 : i32
    %41 = arith.cmpi ne, %40, %c0_i32_24 : i32
    scf.if %41 {
      %c0_25 = arith.constant 0 : index
      %c0_26 = arith.constant 0 : index
      %42 = vector.load %arg11[%c0_25, %c0_26] : memref<128x1xf32, #tpu.memory_space<vmem>>, vector<128x1xf32>
      %c0_27 = arith.constant 0 : index
      %c0_28 = arith.constant 0 : index
      %43 = vector.load %arg12[%c0_27, %c0_28] : memref<128x1xf32, #tpu.memory_space<vmem>>, vector<128x1xf32>
      %44 = math.log %43 : vector<128x1xf32>
      %45 = arith.addf %42, %44 : vector<128x1xf32>
      %c0_29 = arith.constant 0 : index
      %c0_30 = arith.constant 0 : index
      %46 = vector.load %arg13[%c0_29, %c0_30] : memref<128x1xf32, #tpu.memory_space<vmem>>, vector<128x1xf32>
      %47 = arith.subf %45, %46 : vector<128x1xf32>
      %c0_31 = arith.constant 0 : index
      %c0_32 = arith.constant 0 : index
      %48 = vector.load %arg8[%c0_31, %c0_32] : memref<128x1xf32, #tpu.memory_space<vmem>>, vector<128x1xf32>
      %49 = arith.mulf %47, %48 : vector<128x1xf32>
      %c0_33 = arith.constant 0 : index
      %c0_34 = arith.constant 0 : index
      %50 = vector.load %arg9[%c0_33, %c0_34] : memref<128x1xf32, #tpu.memory_space<vmem>>, vector<128x1xf32>
      tpu.vector_store %arg9[%c0_33, %c0_34], %49 {strides = array<i32>} : memref<128x1xf32, #tpu.memory_space<vmem>>, vector<128x1xf32>,
    } else {
    }
    return
  }
  func.func @transform_0(%arg0: i32, %arg1: i32) -> (i32, i32) {
    %c0_i32 = arith.constant 0 : i32
    %c0_i32_0 = arith.constant 0 : i32
    return %arg0, %c0_i32 : i32, i32
  }
  func.func @transform_1(%arg0: i32, %arg1: i32) -> (i32, i32) {
    %c0_i32 = arith.constant 0 : i32
    %c0_i32_0 = arith.constant 0 : i32
    %c0_i32_1 = arith.constant 0 : i32
    return %c0_i32, %c0_i32_0 : i32, i32
  }
  func.func @transform_2(%arg0: i32, %arg1: i32) -> (i32, i32) {
    %c0_i32 = arith.constant 0 : i32
    %c0_i32_0 = arith.constant 0 : i32
    %c0_i32_1 = arith.constant 0 : i32
    return %c0_i32, %c0_i32_0 : i32, i32
  }
  func.func @transform_3(%arg0: i32, %arg1: i32) -> (i32, i32) {
    %c0_i32 = arith.constant 0 : i32
    %c0_i32_0 = arith.constant 0 : i32
    return %c0_i32, %arg1 : i32, i32
  }
  func.func @transform_4(%arg0: i32, %arg1: i32) -> (i32, i32) {
    %c0_i32 = arith.constant 0 : i32
    %c0_i32_0 = arith.constant 0 : i32
    return %c0_i32, %arg1 : i32, i32
  }
  func.func @transform_5(%arg0: i32, %arg1: i32) -> (i32, i32) {
    %c0_i32 = arith.constant 0 : i32
    %c0_i32_0 = arith.constant 0 : i32
    return %arg0, %c0_i32 : i32, i32
  }
  func.func @transform_6(%arg0: i32, %arg1: i32) -> (i32, i32) {
    %c0_i32 = arith.constant 0 : i32
    %c0_i32_0 = arith.constant 0 : i32
    return %arg0, %c0_i32 : i32, i32
  }
  func.func @transform_7(%arg0: i32, %arg1: i32) -> (i32, i32) {
    %c0_i32 = arith.constant 0 : i32
    %c0_i32_0 = arith.constant 0 : i32
    return %arg0, %c0_i32 : i32, i32
  }
}

</mosaic_0001>

<llo_original>
// kernel: squeeze.1
$region0: #{squeeze.1}
  %s0 = inlined_call_operand.vmem [shape: f32[256], index: 0, kind: input, shape index: {}]
  %s1 = inlined_call_operand.vmem [shape: f32[4,64], index: 1, kind: output, shape index: {}]
  $region1: #{squeeze.1} parent=0
    #allocation0 [shape = 'u8[4096]{0}', space=vmem, size = 0x1000, scoped, tag = 'scoped mem for output reshape']
    #allocation1 [shape = 'u8[4096]{0}', space=vmem, size = 0x1000, scoped, tag = 'scoped mem for input reshape']
    %s3 = ssub.s32 4, 1
    %v4 = vld [vmem:[%s0] sm:%s3]
    %5 = vst [vmem:[#allocation1] sm:%s3] %v4
    %v6 = vld [vmem:[#allocation1] sm:$0x3]
    %vm7 = vcmask 523264
    %8 = vst.msk [vmem:[#allocation0] ss:$2 sm:$0x3] %vm7, %v6
    %v9 = vld [vmem:[#allocation1] sm:$0x3]
    %10 = vrot.lane.b32.xlu0 %v9, 64
    %v11 = vpop.permute.xlu0 %10
    %vm12 = vcmask 523264
    %s13 = scalar_lea.vmem [#allocation0], 1
    %14 = vst.msk [vmem:[%s13] ss:$2 sm:$0x3] %vm12, %v11
    %s16 = ssub.s32 16, 1
    %v17 = vld [vmem:[#allocation0] sm:%s16]
    %s19 = ssub.s32 16, 1
    %20 = vst [vmem:[%s1] sm:%s19] %v17

// kernel: trf_lm_trainer_forward.1
$region0: #{trf_lm_trainer_forward.1}
  #allocation0 [shape = 'u32[]', space=smem, size = 0x4, offset = 0x4, fixed_abs, tag = 'smem constant byte address 0x4 - core index']
  #allocation1 [shape = 'u32[72,128]{1,0:T(1,128)}', space=vmem, size = 0x9000, scoped, tag = 'internal scratch']
  #allocation2 [shape = 'bf16[128,128]{1,0:T(8,128)(2,1)}', space=vmem, size = 0x8000, scoped, tag = 'scratch operand']
  #allocation3 [shape = 'f32[128,1]{1,0:T(8,128)}', space=vmem, size = 0x10000, scoped, tag = 'scratch operand']
  #allocation4 [shape = 'f32[128,1]{1,0:T(8,128)}', space=vmem, size = 0x10000, scoped, tag = 'scratch operand']
  #allocation5 [shape = 'f32[128,1]{1,0:T(8,128)}', space=vmem, size = 0x10000, scoped, tag = 'scratch operand']
  %s0 = inlined_call_operand.vmem [shape: bf16[256,64], index: 0, kind: input, shape index: {}]
  %s1 = inlined_call_operand.vmem [shape: bf16[64,128], index: 1, kind: input, shape index: {}]
  %s2 = inlined_call_operand.vmem [shape: f32[1,128], index: 2, kind: input, shape index: {}]
  %s3 = inlined_call_operand.vmem [shape: bf16[128,512], index: 3, kind: input, shape index: {}]
  %s4 = inlined_call_operand.vmem [shape: f32[1,512], index: 4, kind: input, shape index: {}]
  %s5 = inlined_call_operand.vmem [shape: s32[256,1], index: 5, kind: input, shape index: {}]
  %s6 = inlined_call_operand.vmem [shape: f32[256,1], index: 6, kind: input, shape index: {}]
  %s7 = inlined_call_operand.vmem [shape: f32[256,1], index: 7, kind: output, shape index: {}]
  %s8 = sld [smem:[#allocation0]]
  $region107: #{trf_lm_trainer_forward.1} parent=0
    _
  %s10 = ssub.s32 1, %s8
  %s11 = scalar_select 0, %s10, %s8
  $region1: #{trf_lm_trainer_forward.1} parent=0
    #allocation6 [shape = 'u8[131072]{0}', space=vmem, size = 0x20000, scoped, tag = 'input window, operand 3']
    loop: start=0, step=1, limit=6
    $region2: #{trf_lm_trainer_forward.1} parent=1 // loop_pre_header
      _
    $region3: #{trf_lm_trainer_forward.1} parent=1 // loop_header
      %s13 = sphi 0, %s17
      %p14 = scmp.ge.s32.totalorder %s13, 6
      %s20 = sphi 0, %s32
      %s21 = sphi 0, %s28
      %s22 = sphi 0, %s20
      %s23 = sphi 0, %s21
      %s24 = sphi 0, %s22
      %s25 = sphi 0, %s23
      %s35 = sphi 0, %s37
      %s38 = sphi 0, %s35
      %s39 = sphi 0, %s38
      %s55 = sphi 0, %s39
      %s59 = sphi 0, %s59
      %s61 = sphi 0, %s59
      %s62 = sphi 0, %s61
      %s76 = sphi 0, %s62
      %s80 = sphi 0, %s80
      %s82 = sphi 0, %s80
      %s83 = sphi 0, %s82
      %s97 = sphi 0, %s83
      %s103 = sphi 0, %s105
      %s106 = sphi 0, %s103
      %s107 = sphi 0, %s106
      %s123 = sphi 0, %s107
      %s129 = sphi 0, %s131
      %s132 = sphi 0, %s129
      %s133 = sphi 0, %s132
      %s149 = sphi 0, %s133
      %s155 = sphi 0, %s157
      %s158 = sphi 0, %s155
      %s159 = sphi 0, %s158
      %s175 = sphi 0, %s159
      %s181 = sphi 0, %s183
      %s184 = sphi 0, %s181
      %s185 = sphi 0, %s184
      %s201 = sphi 0, %s185
      %s207 = sphi 0, %s209
      %s210 = sphi 0, %s207
      %s211 = sphi 0, %s210
      %s227 = sphi 0, %s211
    $region4: #{trf_lm_trainer_forward.1} parent=1 // loop_header_branch
      %16 = sbr.rel (%p14) target = $region8
    $region5: #{trf_lm_trainer_forward.1} parent=1 // loop_body
      %s18 = ssub.s32 %s13, 1
      %s19 = ssub.s32 %s13, 2
      %s26 = sadd.s32 1, %s21
      %p27 = scmp.ge.s32.totalorder %s26, 2
      %s28 = scalar_select %p27, 0, %s26
      %s29 = sadd.s32 1, %s20
      %s30 = scalar_select %p27, %s29, %s20
      %p31 = scmp.ge.s32.totalorder %s30, 2
      %s32 = scalar_select %p31, 0, %s30
      %s33 = ssub.s32 %s20, %s32
      %p34 = scmp.eq.s32.totalorder %s33, 0
      %s36 = sadd.s32 %s35, 1
      %s37 = scalar_select %p34, %s35, %s36
      %p40 = pneg %p34
      %p41 = scmp.eq.s32.totalorder %s13, 3
      %p42 = por %p40, %p41
      %p43 = scmp.ne.s32.totalorder %s35, %s38
      %p44 = scmp.eq.s32.totalorder %s13, 0
      %p45 = por %p43, %p44
      %p46 = scmp.ne.s32.totalorder %s35, %s38
      %p47 = scmp.eq.s32.totalorder %s18, 3
      %p48 = por %p46, %p47
      %p49 = scmp.ne.s32.totalorder %s38, %s39
      %p50 = scmp.eq.s32.totalorder %s18, 0
      %p51 = por %p49, %p50
      %p52 = scmp.ne.s32.totalorder %s38, %s39
      %p53 = scmp.eq.s32.totalorder %s19, 3
      %p54 = por %p52, %p53
      %p56 = scmp.ne.s32.totalorder %s39, %s55
      %p57 = scmp.eq.s32.totalorder %s19, 0
      %p58 = por %p56, %p57
      %s60 = sadd.s32 %s59, 1
      %p63 = scmp.eq.s32.totalorder %s13, 3
      %p64 = scmp.ne.s32.totalorder %s59, %s61
      %p65 = scmp.eq.s32.totalorder %s13, 0
      %p66 = por %p64, %p65
      %p67 = scmp.ne.s32.totalorder %s59, %s61
      %p68 = scmp.eq.s32.totalorder %s18, 3
      %p69 = por %p67, %p68
      %p70 = scmp.ne.s32.totalorder %s61, %s62
      %p71 = scmp.eq.s32.totalorder %s18, 0
      %p72 = por %p70, %p71
      %p73 = scmp.ne.s32.totalorder %s61, %s62
      %p74 = scmp.eq.s32.totalorder %s19, 3
      %p75 = por %p73, %p74
      %p77 = scmp.ne.s32.totalorder %s62, %s76
      %p78 = scmp.eq.s32.totalorder %s19, 0
      %p79 = por %p77, %p78
      %s81 = sadd.s32 %s80, 1
      %p84 = scmp.eq.s32.totalorder %s13, 3
      %p85 = scmp.ne.s32.totalorder %s80, %s82
      %p86 = scmp.eq.s32.totalorder %s13, 0
      %p87 = por %p85, %p86
      %p88 = scmp.ne.s32.totalorder %s80, %s82
      %p89 = scmp.eq.s32.totalorder %s18, 3
      %p90 = por %p88, %p89
      %p91 = scmp.ne.s32.totalorder %s82, %s83
      %p92 = scmp.eq.s32.totalorder %s18, 0
      %p93 = por %p91, %p92
      %p94 = scmp.ne.s32.totalorder %s82, %s83
      %p95 = scmp.eq.s32.totalorder %s19, 3
      %p96 = por %p94, %p95
      %p98 = scmp.ne.s32.totalorder %s83, %s97
      %p99 = scmp.eq.s32.totalorder %s19, 0
      %p100 = por %p98, %p99
      %s101 = ssub.s32 %s21, %s28
      %p102 = scmp.eq.s32.totalorder %s101, 0
      %s104 = sadd.s32 %s103, 1
      %s105 = scalar_select %p102, %s103, %s104
      %p108 = pneg %p102
      %p109 = scmp.eq.s32.totalorder %s13, 3
      %p110 = por %p108, %p109
      %p111 = scmp.ne.s32.totalorder %s103, %s106
      %p112 = scmp.eq.s32.totalorder %s13, 0
      %p113 = por %p111, %p112
      %p114 = scmp.ne.s32.totalorder %s103, %s106
      %p115 = scmp.eq.s32.totalorder %s18, 3
      %p116 = por %p114, %p115
      %p117 = scmp.ne.s32.totalorder %s106, %s107
      %p118 = scmp.eq.s32.totalorder %s18, 0
      %p119 = por %p117, %p118
      %p120 = scmp.ne.s32.totalorder %s106, %s107
      %p121 = scmp.eq.s32.totalorder %s19, 3
      %p122 = por %p120, %p121
      %p124 = scmp.ne.s32.totalorder %s107, %s123
      %p125 = scmp.eq.s32.totalorder %s19, 0
      %p126 = por %p124, %p125
      %s127 = ssub.s32 %s21, %s28
      %p128 = scmp.eq.s32.totalorder %s127, 0
      %s130 = sadd.s32 %s129, 1
      %s131 = scalar_select %p128, %s129, %s130
      %p134 = pneg %p128
      %p135 = scmp.eq.s32.totalorder %s13, 3
      %p136 = por %p134, %p135
      %p137 = scmp.ne.s32.totalorder %s129, %s132
      %p138 = scmp.eq.s32.totalorder %s13, 0
      %p139 = por %p137, %p138
      %p140 = scmp.ne.s32.totalorder %s129, %s132
      %p141 = scmp.eq.s32.totalorder %s18, 3
      %p142 = por %p140, %p141
      %p143 = scmp.ne.s32.totalorder %s132, %s133
      %p144 = scmp.eq.s32.totalorder %s18, 0
      %p145 = por %p143, %p144
      %p146 = scmp.ne.s32.totalorder %s132, %s133
      %p147 = scmp.eq.s32.totalorder %s19, 3
      %p148 = por %p146, %p147
      %p150 = scmp.ne.s32.totalorder %s133, %s149
      %p151 = scmp.eq.s32.totalorder %s19, 0
      %p152 = por %p150, %p151
      %s153 = ssub.s32 %s20, %s32
      %p154 = scmp.eq.s32.totalorder %s153, 0
      %s156 = sadd.s32 %s155, 1
      %s157 = scalar_select %p154, %s155, %s156
      %p160 = pneg %p154
      %p161 = scmp.eq.s32.totalorder %s13, 3
      %p162 = por %p160, %p161
      %p163 = scmp.ne.s32.totalorder %s155, %s158
      %p164 = scmp.eq.s32.totalorder %s13, 0
      %p165 = por %p163, %p164
      %p166 = scmp.ne.s32.totalorder %s155, %s158
      %p167 = scmp.eq.s32.totalorder %s18, 3
      %p168 = por %p166, %p167
      %p169 = scmp.ne.s32.totalorder %s158, %s159
      %p170 = scmp.eq.s32.totalorder %s18, 0
      %p171 = por %p169, %p170
      %p172 = scmp.ne.s32.totalorder %s158, %s159
      %p173 = scmp.eq.s32.totalorder %s19, 3
      %p174 = por %p172, %p173
      %p176 = scmp.ne.s32.totalorder %s159, %s175
      %p177 = scmp.eq.s32.totalorder %s19, 0
      %p178 = por %p176, %p177
      %s179 = ssub.s32 %s20, %s32
      %p180 = scmp.eq.s32.totalorder %s179, 0
      %s182 = sadd.s32 %s181, 1
      %s183 = scalar_select %p180, %s181, %s182
      %p186 = pneg %p180
      %p187 = scmp.eq.s32.totalorder %s13, 3
      %p188 = por %p186, %p187
      %p189 = scmp.ne.s32.totalorder %s181, %s184
      %p190 = scmp.eq.s32.totalorder %s13, 0
      %p191 = por %p189, %p190
      %p192 = scmp.ne.s32.totalorder %s181, %s184
      %p193 = scmp.eq.s32.totalorder %s18, 3
      %p194 = por %p192, %p193
      %p195 = scmp.ne.s32.totalorder %s184, %s185
      %p196 = scmp.eq.s32.totalorder %s18, 0
      %p197 = por %p195, %p196
      %p198 = scmp.ne.s32.totalorder %s184, %s185
      %p199 = scmp.eq.s32.totalorder %s19, 3
      %p200 = por %p198, %p199
      %p202 = scmp.ne.s32.totalorder %s185, %s201
      %p203 = scmp.eq.s32.totalorder %s19, 0
      %p204 = por %p202, %p203
      %s205 = ssub.s32 %s20, %s32
      %p206 = scmp.eq.s32.totalorder %s205, 0
      %s208 = sadd.s32 %s207, 1
      %s209 = scalar_select %p206, %s207, %s208
      %p212 = pneg %p206
      %p213 = scmp.eq.s32.totalorder %s13, 3
      %p214 = por %p212, %p213
      %p215 = scmp.ne.s32.totalorder %s207, %s210
      %p216 = scmp.eq.s32.totalorder %s13, 0
      %p217 = por %p215, %p216
      %p218 = scmp.ne.s32.totalorder %s207, %s210
      %p219 = scmp.eq.s32.totalorder %s18, 3
      %p220 = por %p218, %p219
      %p221 = scmp.ne.s32.totalorder %s210, %s211
      %p222 = scmp.eq.s32.totalorder %s18, 0
      %p223 = por %p221, %p222
      %p224 = scmp.ne.s32.totalorder %s210, %s211
      %p225 = scmp.eq.s32.totalorder %s19, 3
      %p226 = por %p224, %p225
      %p228 = scmp.ne.s32.totalorder %s211, %s227
      %p229 = scmp.eq.s32.totalorder %s19, 0
      %p230 = por %p228, %p229
      %p231 = scmp.le.s32.totalorder 1, %s13
      %p232 = scmp.lt.s32.totalorder %s13, 5
      %p233 = pnand %p231, %p232
      %p234 = pneg %p233
      // Predicated region
      $region9: #{trf_lm_trainer_forward.1} parent=5 // pred_check
        _
      $region10: #{trf_lm_trainer_forward.1} parent=5 // pred_check_branch
        %236 = sbr.rel (%p233) target = $region12
      $region11: #{trf_lm_trainer_forward.1} parent=5 // pred_region
        %s237 = ssub.s32 %s13, 1
        // Predicated region
        $region13: #{trf_lm_trainer_forward.1} parent=11 // pred_check
          %p238 = pneg %p72
        $region14: #{trf_lm_trainer_forward.1} parent=11 // pred_check_branch
          %240 = sbr.rel (%p238) target = $region16
        $region15: #{trf_lm_trainer_forward.1} parent=11 // pred_region
          _
        $region16: #{trf_lm_trainer_forward.1} parent=11 // pred_fallthru
          _
        // Predicated region
        $region17: #{trf_lm_trainer_forward.1} parent=11 // pred_check
          %p241 = pneg %p93
        $region18: #{trf_lm_trainer_forward.1} parent=11 // pred_check_branch
          %243 = sbr.rel (%p241) target = $region20
        $region19: #{trf_lm_trainer_forward.1} parent=11 // pred_region
          _
        $region20: #{trf_lm_trainer_forward.1} parent=11 // pred_fallthru
          _
      $region12: #{trf_lm_trainer_forward.1} parent=5 // pred_fallthru
        _
      %p244 = scmp.lt.s32.totalorder %s13, 4
      // Predicated region
      $region21: #{trf_lm_trainer_forward.1} parent=5 // pred_check
        %p245 = pneg %p244
      $region22: #{trf_lm_trainer_forward.1} parent=5 // pred_check_branch
        %247 = sbr.rel (%p245) target = $region24
      $region23: #{trf_lm_trainer_forward.1} parent=5 // pred_region
        // Predicated region
        $region25: #{trf_lm_trainer_forward.1} parent=23 // pred_check
          %p248 = pneg %p45
        $region26: #{trf_lm_trainer_forward.1} parent=23 // pred_check_branch
          %250 = sbr.rel (%p248) target = $region28
        $region27: #{trf_lm_trainer_forward.1} parent=23 // pred_region
          %s251 = smul.u32 16, %s20
          %p252 = scmp.lt.s32.totalorder %s251, 31
          %s253 = scalar_select %p252, %s251, 31
          %s254 = smul.addr %s253, 4
          %s255 = scalar_lea.vmem %s0, %s254
          %s256 = smul.u32 16, %s20
        $region28: #{trf_lm_trainer_forward.1} parent=23 // pred_fallthru
          _
        // Predicated region
        $region29: #{trf_lm_trainer_forward.1} parent=23 // pred_check
          %p257 = pneg %p113
        $region30: #{trf_lm_trainer_forward.1} parent=23 // pred_check_branch
          %259 = sbr.rel (%p257) target = $region32
        $region31: #{trf_lm_trainer_forward.1} parent=23 // pred_region
          %s260 = sand.u32 %s103, 1
          %s261 = sand.u32 %s103, 1
          %s262 = smul.addr %s261, 128
          %s263 = scalar_lea.vmem [#allocation6], %s262
          %s264 = smul.u32 2, %s21
          %s265 = smul.addr %s264, 4
          %s266 = scalar_lea.vmem %s3, %s265
          // Predicated region
          $region33: #{trf_lm_trainer_forward.1} parent=31 // pred_check
            _
          $region34: #{trf_lm_trainer_forward.1} parent=31 // pred_check_branch
            %268 = sbr.rel (0) target = $region36
          $region35: #{trf_lm_trainer_forward.1} parent=31 // pred_region
            // Predicated region
            $region37: #{trf_lm_trainer_forward.1} parent=35 // pred_check
              _
            $region38: #{trf_lm_trainer_forward.1} parent=35 // pred_check_branch
              %270 = sbr.rel (0) target = $region40
            $region39: #{trf_lm_trainer_forward.1} parent=35 // pred_region
              // Predicated region
              $region52: #{trf_lm_trainer_forward.1} parent=39 // pred_check
                _
              $region53: #{trf_lm_trainer_forward.1} parent=39 // pred_check_branch
                %316 = sbr.rel (0) target = $region55
              $region54: #{trf_lm_trainer_forward.1} parent=39 // pred_region
                loop: start=0, step=1, limit=1
                $region56: #{trf_lm_trainer_forward.1} parent=54 // loop_pre_header
                  _
                $region57: #{trf_lm_trainer_forward.1} parent=54 // loop_header
                  %s318 = sphi 0, %s322
                  %p319 = scmp.ge.s32.totalorder %s318, 1
                  %s323 = sphi %s266, %s266
                  %s324 = sphi %s263, %s263
                $region58: #{trf_lm_trainer_forward.1} parent=54 // loop_header_branch
                  %321 = sbr.rel (%p319) target = $region62
                $region59: #{trf_lm_trainer_forward.1} parent=54 // loop_body
                  %v325 = vld [vmem:[%s323] sm:$0xff]
                  %326 = vst [vmem:[%s324] sm:$0xff] %v325
                  %v327 = vld [vmem:[%s323 + $0x10] sm:$0xff]
                  %328 = vst [vmem:[%s324 + $0x8] sm:$0xff] %v327
                  %v329 = vld [vmem:[%s323 + $0x20] sm:$0xff]
                  %330 = vst [vmem:[%s324 + $0x10] sm:$0xff] %v329
                  %v331 = vld [vmem:[%s323 + $0x30] sm:$0xff]
                  %332 = vst [vmem:[%s324 + $0x18] sm:$0xff] %v331
                  %v333 = vld [vmem:[%s323 + $0x40] sm:$0xff]
                  %334 = vst [vmem:[%s324 + $0x20] sm:$0xff] %v333
                  %v335 = vld [vmem:[%s323 + $0x50] sm:$0xff]
                  %336 = vst [vmem:[%s324 + $0x28] sm:$0xff] %v335
                  %v337 = vld [vmem:[%s323 + $0x60] sm:$0xff]
                  %338 = vst [vmem:[%s324 + $0x30] sm:$0xff] %v337
                  %v339 = vld [vmem:[%s323 + $0x70] sm:$0xff]
                  %340 = vst [vmem:[%s324 + $0x38] sm:$0xff] %v339
                  %v341 = vld [vmem:[%s323 + $0x80] sm:$0xff]
                  %342 = vst [vmem:[%s324 + $0x40] sm:$0xff] %v341
                  %v343 = vld [vmem:[%s323 + $0x90] sm:$0xff]
                  %344 = vst [vmem:[%s324 + $0x48] sm:$0xff] %v343
                  %v345 = vld [vmem:[%s323 + $0xa0] sm:$0xff]
                  %346 = vst [vmem:[%s324 + $0x50] sm:$0xff] %v345
                  %v347 = vld [vmem:[%s323 + $0xb0] sm:$0xff]
                  %348 = vst [vmem:[%s324 + $0x58] sm:$0xff] %v347
                  %v349 = vld [vmem:[%s323 + $0xc0] sm:$0xff]
                  %350 = vst [vmem:[%s324 + $0x60] sm:$0xff] %v349
                  %v351 = vld [vmem:[%s323 + $0xd0] sm:$0xff]
                  %352 = vst [vmem:[%s324 + $0x68] sm:$0xff] %v351
                  %v353 = vld [vmem:[%s323 + $0xe0] sm:$0xff]
                  %354 = vst [vmem:[%s324 + $0x70] sm:$0xff] %v353
                  %v355 = vld [vmem:[%s323 + $0xf0] sm:$0xff]
                  %356 = vst [vmem:[%s324 + $0x78] sm:$0xff] %v355
                $region60: #{trf_lm_trainer_forward.1} parent=54 // loop_footer
                  %s322 = sadd.s32 1, %s318
                $region61: #{trf_lm_trainer_forward.1} parent=54 // loop_footer_branch
                  %317 = sbr.rel target = $region57
                $region62: #{trf_lm_trainer_forward.1} parent=54 // loop_exit
                  _
              $region55: #{trf_lm_trainer_forward.1} parent=39 // pred_fallthru
                _
              // Predicated region
              $region63: #{trf_lm_trainer_forward.1} parent=39 // pred_check
                _
              $region64: #{trf_lm_trainer_forward.1} parent=39 // pred_check_branch
                %358 = sbr.rel target = $region66
              $region65: #{trf_lm_trainer_forward.1} parent=39 // pred_region
                _
              $region66: #{trf_lm_trainer_forward.1} parent=39 // pred_fallthru
                _
            $region40: #{trf_lm_trainer_forward.1} parent=35 // pred_fallthru
              _
            // Predicated region
            $region41: #{trf_lm_trainer_forward.1} parent=35 // pred_check
              _
            $region42: #{trf_lm_trainer_forward.1} parent=35 // pred_check_branch
              %272 = sbr.rel target = $region44
            $region43: #{trf_lm_trainer_forward.1} parent=35 // pred_region
              %s274 = ssub.s32 256, 1
              loop: start=0, step=1, limit=1
              $region45: #{trf_lm_trainer_forward.1} parent=43 // loop_pre_header
                _
              $region46: #{trf_lm_trainer_forward.1} parent=43 // loop_header
                %s276 = sphi 0, %s280
                %p277 = scmp.ge.s32.totalorder %s276, 1
                %s281 = sphi %s266, %s266
                %s282 = sphi %s263, %s263
              $region47: #{trf_lm_trainer_forward.1} parent=43 // loop_header_branch
                %279 = sbr.rel (%p277) target = $region51
              $region48: #{trf_lm_trainer_forward.1} parent=43 // loop_body
                %v283 = vld [vmem:[%s281] sm:%s274]
                %284 = vst [vmem:[%s282] sm:%s274] %v283
                %v285 = vld [vmem:[%s281 + $0x10] sm:%s274]
                %286 = vst [vmem:[%s282 + $0x8] sm:%s274] %v285
                %v287 = vld [vmem:[%s281 + $0x20] sm:%s274]
                %288 = vst [vmem:[%s282 + $0x10] sm:%s274] %v287
                %v289 = vld [vmem:[%s281 + $0x30] sm:%s274]
                %290 = vst [vmem:[%s282 + $0x18] sm:%s274] %v289
                %v291 = vld [vmem:[%s281 + $0x40] sm:%s274]
                %292 = vst [vmem:[%s282 + $0x20] sm:%s274] %v291
                %v293 = vld [vmem:[%s281 + $0x50] sm:%s274]
                %294 = vst [vmem:[%s282 + $0x28] sm:%s274] %v293
                %v295 = vld [vmem:[%s281 + $0x60] sm:%s274]
                %296 = vst [vmem:[%s282 + $0x30] sm:%s274] %v295
                %v297 = vld [vmem:[%s281 + $0x70] sm:%s274]
                %298 = vst [vmem:[%s282 + $0x38] sm:%s274] %v297
                %v299 = vld [vmem:[%s281 + $0x80] sm:%s274]
                %300 = vst [vmem:[%s282 + $0x40] sm:%s274] %v299
                %v301 = vld [vmem:[%s281 + $0x90] sm:%s274]
                %302 = vst [vmem:[%s282 + $0x48] sm:%s274] %v301
                %v303 = vld [vmem:[%s281 + $0xa0] sm:%s274]
                %304 = vst [vmem:[%s282 + $0x50] sm:%s274] %v303
                %v305 = vld [vmem:[%s281 + $0xb0] sm:%s274]
                %306 = vst [vmem:[%s282 + $0x58] sm:%s274] %v305
                %v307 = vld [vmem:[%s281 + $0xc0] sm:%s274]
                %308 = vst [vmem:[%s282 + $0x60] sm:%s274] %v307
                %v309 = vld [vmem:[%s281 + $0xd0] sm:%s274]
                %310 = vst [vmem:[%s282 + $0x68] sm:%s274] %v309
                %v311 = vld [vmem:[%s281 + $0xe0] sm:%s274]
                %312 = vst [vmem:[%s282 + $0x70] sm:%s274] %v311
                %v313 = vld [vmem:[%s281 + $0xf0] sm:%s274]
                %314 = vst [vmem:[%s282 + $0x78] sm:%s274] %v313
              $region49: #{trf_lm_trainer_forward.1} parent=43 // loop_footer
                %s280 = sadd.s32 1, %s276
              $region50: #{trf_lm_trainer_forward.1} parent=43 // loop_footer_branch
                %275 = sbr.rel target = $region46
              $region51: #{trf_lm_trainer_forward.1} parent=43 // loop_exit
                _
            $region44: #{trf_lm_trainer_forward.1} parent=35 // pred_fallthru
              _
          $region36: #{trf_lm_trainer_forward.1} parent=31 // pred_fallthru
            _
          %359 = vnop
        $region32: #{trf_lm_trainer_forward.1} parent=23 // pred_fallthru
          _
        // Predicated region
        $region67: #{trf_lm_trainer_forward.1} parent=23 // pred_check
          %p360 = pneg %p139
        $region68: #{trf_lm_trainer_forward.1} parent=23 // pred_check_branch
          %362 = sbr.rel (%p360) target = $region70
        $region69: #{trf_lm_trainer_forward.1} parent=23 // pred_region
          %s363 = smul.u32 2, %s21
          %p364 = scmp.lt.s32.totalorder %s363, 3
          %s365 = scalar_select %p364, %s363, 3
          %s366 = scalar_lea.vmem %s4, %s365
          %s367 = smul.u32 2, %s21
        $region70: #{trf_lm_trainer_forward.1} parent=23 // pred_fallthru
          _
        // Predicated region
        $region71: #{trf_lm_trainer_forward.1} parent=23 // pred_check
          %p368 = pneg %p165
        $region72: #{trf_lm_trainer_forward.1} parent=23 // pred_check_branch
          %370 = sbr.rel (%p368) target = $region74
        $region73: #{trf_lm_trainer_forward.1} parent=23 // pred_region
          %s371 = smul.u32 16, %s20
          %p372 = scmp.lt.s32.totalorder %s371, 31
          %s373 = scalar_select %p372, %s371, 31
          %s374 = smul.addr %s373, 8
          %s375 = scalar_lea.vmem %s5, %s374
          %s376 = smul.u32 16, %s20
        $region74: #{trf_lm_trainer_forward.1} parent=23 // pred_fallthru
          _
        // Predicated region
        $region75: #{trf_lm_trainer_forward.1} parent=23 // pred_check
          %p377 = pneg %p191
        $region76: #{trf_lm_trainer_forward.1} parent=23 // pred_check_branch
          %379 = sbr.rel (%p377) target = $region78
        $region77: #{trf_lm_trainer_forward.1} parent=23 // pred_region
          %s380 = smul.u32 16, %s20
          %p381 = scmp.lt.s32.totalorder %s380, 31
          %s382 = scalar_select %p381, %s380, 31
          %s383 = smul.addr %s382, 8
          %s384 = scalar_lea.vmem %s6, %s383
          %s385 = smul.u32 16, %s20
        $region78: #{trf_lm_trainer_forward.1} parent=23 // pred_fallthru
          _
      $region24: #{trf_lm_trainer_forward.1} parent=5 // pred_fallthru
        _
      %p386 = scmp.le.s32.totalorder 1, %s13
      %p387 = scmp.lt.s32.totalorder %s13, 5
      %p388 = pnand %p386, %p387
      %p389 = pneg %p388
      // Predicated region
      $region79: #{trf_lm_trainer_forward.1} parent=5 // pred_check
        _
      $region80: #{trf_lm_trainer_forward.1} parent=5 // pred_check_branch
        %391 = sbr.rel (%p388) target = $region82
      $region81: #{trf_lm_trainer_forward.1} parent=5 // pred_region
        %s392 = ssub.s32 %s13, 1
        %s393 = sand.u32 %s106, 1
        %s394 = sand.u32 %s106, 1
        %s395 = smul.addr %s394, 128
        %s396 = scalar_lea.vmem [#allocation6], %s395
        // Predicated region
        $region83: #{trf_lm_trainer_forward.1} parent=81 // pred_check
          %p397 = pneg %p119
        $region84: #{trf_lm_trainer_forward.1} parent=81 // pred_check_branch
          %399 = sbr.rel (%p397) target = $region86
        $region85: #{trf_lm_trainer_forward.1} parent=81 // pred_region
          _
        $region86: #{trf_lm_trainer_forward.1} parent=81 // pred_fallthru
          _
        %s400 = smul.u32 16, %s22
        %p401 = scmp.lt.s32.totalorder %s400, 31
        %s402 = scalar_select %p401, %s400, 31
        %s403 = smul.addr %s402, 4
        %s404 = scalar_lea.vmem %s0, %s403
        %p405 = pneg %p51
        %p406 = pneg %p48
        %p407 = pneg %p72
        %p408 = pneg %p69
        %p409 = pneg %p93
        %p410 = pneg %p90
        %s411 = sand.u32 %s106, 1
        %s412 = sand.u32 %s106, 1
        %s413 = smul.addr %s412, 128
        %s414 = scalar_lea.vmem [#allocation6], %s413
        %p415 = pneg %p119
        %p416 = pneg %p116
        %s417 = smul.u32 2, %s23
        %p418 = scmp.lt.s32.totalorder %s417, 3
        %s419 = scalar_select %p418, %s417, 3
        %s420 = scalar_lea.vmem %s4, %s419
        %p421 = pneg %p145
        %p422 = pneg %p142
        %s423 = smul.u32 16, %s22
        %p424 = scmp.lt.s32.totalorder %s423, 31
        %s425 = scalar_select %p424, %s423, 31
        %s426 = smul.addr %s425, 8
        %s427 = scalar_lea.vmem %s5, %s426
        %p428 = pneg %p171
        %p429 = pneg %p168
        %s430 = smul.u32 16, %s22
        %p431 = scmp.lt.s32.totalorder %s430, 31
        %s432 = scalar_select %p431, %s430, 31
        %s433 = smul.addr %s432, 8
        %s434 = scalar_lea.vmem %s6, %s433
        %p435 = pneg %p197
        %p436 = pneg %p194
        %p437 = pneg %p223
        %p438 = pneg %p220
        %s439 = smul.u32 16, %s22
        %p440 = scmp.lt.s32.totalorder %s439, 31
        %s441 = scalar_select %p440, %s439, 31
        %s442 = smul.addr %s441, 8
        %s443 = scalar_lea.vmem %s7, %s442
        %s444 = smul.u32 16, %s22
        %p445 = scmp.lt.s32.totalorder %s444, 31
        %s446 = scalar_select %p445, %s444, 31
        %s447 = smul.addr %s446, 4
        %s448 = scalar_lea.vmem %s0, %s447
        %s449 = smul.u32 16, %s22
        %s450 = smul.u32 2, %s23
        %s451 = smul.u32 2, %s23
        %p452 = scmp.lt.s32.totalorder %s451, 3
        %s453 = scalar_select %p452, %s451, 3
        %s454 = scalar_lea.vmem %s4, %s453
        %s455 = smul.u32 2, %s23
        %s456 = smul.u32 16, %s22
        %p457 = scmp.lt.s32.totalorder %s456, 31
        %s458 = scalar_select %p457, %s456, 31
        %s459 = smul.addr %s458, 8
        %s460 = scalar_lea.vmem %s5, %s459
        %s461 = smul.u32 16, %s22
        %s462 = smul.u32 16, %s22
        %p463 = scmp.lt.s32.totalorder %s462, 31
        %s464 = scalar_select %p463, %s462, 31
        %s465 = smul.addr %s464, 8
        %s466 = scalar_lea.vmem %s6, %s465
        %s467 = smul.u32 16, %s22
        %s468 = smul.u32 16, %s22
        %p469 = scmp.lt.s32.totalorder %s468, 31
        %s470 = scalar_select %p469, %s468, 31
        %s471 = smul.addr %s470, 8
        %s472 = scalar_lea.vmem %s7, %s471
        %s473 = smul.u32 16, %s22
        %p475 = scmp.eq.s32.totalorder %s23, 0
        // Predicated region
        $region87: #{trf_lm_trainer_forward.1} parent=81 // pred_check
          %p476 = pneg %p475
        $region88: #{trf_lm_trainer_forward.1} parent=81 // pred_check_branch
          %478 = sbr.rel (%p476) target = $region90
        $region89: #{trf_lm_trainer_forward.1} parent=81 // pred_region
          %v479 = vld [vmem:[%s448] sm:$0xf]
          %v480 = vld [vmem:[%s448 + $0x4] sm:$0xf]
          %v481 = vld [vmem:[%s448 + $0x8] sm:$0xf]
          %v482 = vld [vmem:[%s448 + $0xc] sm:$0xf]
          %v483 = vld [vmem:[%s448 + $0x10] sm:$0xf]
          %v484 = vld [vmem:[%s448 + $0x14] sm:$0xf]
          %v485 = vld [vmem:[%s448 + $0x18] sm:$0xf]
          %v486 = vld [vmem:[%s448 + $0x1c] sm:$0xf]
          %v487 = vld [vmem:[%s448 + $0x20] sm:$0xf]
          %v488 = vld [vmem:[%s448 + $0x24] sm:$0xf]
          %v489 = vld [vmem:[%s448 + $0x28] sm:$0xf]
          %v490 = vld [vmem:[%s448 + $0x2c] sm:$0xf]
          %v491 = vld [vmem:[%s448 + $0x30] sm:$0xf]
          %v492 = vld [vmem:[%s448 + $0x34] sm:$0xf]
          %v493 = vld [vmem:[%s448 + $0x38] sm:$0xf]
          %v494 = vld [vmem:[%s448 + $0x3c] sm:$0xf]
          %v495 = vld [vmem:[%s1] sm:$0xf]
          %v496 = vld [vmem:[%s1 + $0x4] sm:$0xf]
          %v497 = vld [vmem:[%s1 + $0x8] sm:$0xf]
          %v498 = vld [vmem:[%s1 + $0xc] sm:$0xf]
          %v499 = vld [vmem:[%s1 + $0x10] sm:$0xf]
          %v500 = vld [vmem:[%s1 + $0x14] sm:$0xf]
          %v501 = vld [vmem:[%s1 + $0x18] sm:$0xf]
          %v502 = vld [vmem:[%s1 + $0x1c] sm:$0xf]
          %v503 = vld [vmem:[%s2] sm:$0x1]
          %v505 = vperm.slane %v503, 0
          %v523 = vunpack.c.l.b16 %v479
          %v524 = vunpack.c.l.b16 %v480
          %v525 = vunpack.c.l.b16 %v481
          %v526 = vunpack.c.l.b16 %v482
          %v527 = vunpack.c.l.b16 %v483
          %v528 = vunpack.c.l.b16 %v484
          %v529 = vunpack.c.l.b16 %v485
          %v530 = vunpack.c.l.b16 %v486
          %v531 = vunpack.c.l.b16 %v487
          %v532 = vunpack.c.l.b16 %v488
          %v533 = vunpack.c.l.b16 %v489
          %v534 = vunpack.c.l.b16 %v490
          %v535 = vunpack.c.l.b16 %v491
          %v536 = vunpack.c.l.b16 %v492
          %v537 = vunpack.c.l.b16 %v493
          %v538 = vunpack.c.l.b16 %v494
          %v539 = vpack.c.b16 %v524, %v523
          %v540 = vpack.c.b16 %v526, %v525
          %v541 = vpack.c.b16 %v528, %v527
          %v542 = vpack.c.b16 %v530, %v529
          %v543 = vpack.c.b16 %v532, %v531
          %v544 = vpack.c.b16 %v534, %v533
          %v545 = vpack.c.b16 %v536, %v535
          %v546 = vpack.c.b16 %v538, %v537
          %v555 = vunpack.c.l.b16 %v495
          %v556 = vunpack.c.l.b16 %v496
          %v557 = vunpack.c.l.b16 %v497
          %v558 = vunpack.c.l.b16 %v498
          %v559 = vunpack.c.l.b16 %v499
          %v560 = vunpack.c.l.b16 %v500
          %v561 = vunpack.c.l.b16 %v501
          %v562 = vunpack.c.l.b16 %v502
          %v563 = vpack.c.b16 %v556, %v555
          %v564 = vpack.c.b16 %v558, %v557
          %v565 = vpack.c.b16 %v560, %v559
          %v566 = vpack.c.b16 %v562, %v561
          %vm571 = vcmask 523264
          %v573 = vsel %vm571, %v539, 0
          %v576 = vsel %vm571, %v540, 0
          %v579 = vsel %vm571, %v541, 0
          %v582 = vsel %vm571, %v542, 0
          %v585 = vsel %vm571, %v543, 0
          %v588 = vsel %vm571, %v544, 0
          %v591 = vsel %vm571, %v545, 0
          %v594 = vsel %vm571, %v546, 0
          %596 = vmatpush.bf16.msra.mxu0 0
          %597 = vmatpush.bf16.msra.mxu0 0
          %598 = vmatpush.bf16.msra.mxu0 0
          %599 = vmatpush.bf16.msra.mxu0 0
          %600 = vmatpush.bf16.msra.mxu0 %v566
          %601 = vmatpush.bf16.msra.mxu0 %v565
          %602 = vmatpush.bf16.msra.mxu0 %v564
          %603 = vmatpush.bf16.msra.mxu0 %v563
          %604 = vmatmul.bf16.gmra.mxu0 %v573
          %v605 = vpop.f32.mrf.mxu0
          %v606 = vadd.f32 %v505, %v605
          %v607 = vpop.f32.mrf.mxu0
          %v608 = vadd.f32 %v505, %v607
          %609 = vmatmul.bf16.gmra.mxu0 %v576
          %v610 = vpop.f32.mrf.mxu0
          %v611 = vadd.f32 %v505, %v610
          %v612 = vpop.f32.mrf.mxu0
          %v613 = vadd.f32 %v505, %v612
          %614 = vmatmul.bf16.gmra.mxu0 %v579
          %v615 = vpop.f32.mrf.mxu0
          %v616 = vadd.f32 %v505, %v615
          %v617 = vpop.f32.mrf.mxu0
          %v618 = vadd.f32 %v505, %v617
          %619 = vmatmul.bf16.gmra.mxu0 %v582
          %v620 = vpop.f32.mrf.mxu0
          %v621 = vadd.f32 %v505, %v620
          %v622 = vpop.f32.mrf.mxu0
          %v623 = vadd.f32 %v505, %v622
          %624 = vmatmul.bf16.gmra.mxu0 %v585
          %v625 = vpop.f32.mrf.mxu0
          %v626 = vadd.f32 %v505, %v625
          %v627 = vpop.f32.mrf.mxu0
          %v628 = vadd.f32 %v505, %v627
          %629 = vmatmul.bf16.gmra.mxu0 %v588
          %v630 = vpop.f32.mrf.mxu0
          %v631 = vadd.f32 %v505, %v630
          %v632 = vpop.f32.mrf.mxu0
          %v633 = vadd.f32 %v505, %v632
          %634 = vmatmul.bf16.gmra.mxu0 %v591
          %v635 = vpop.f32.mrf.mxu0
          %v636 = vadd.f32 %v505, %v635
          %v637 = vpop.f32.mrf.mxu0
          %v638 = vadd.f32 %v505, %v637
          %639 = vmatmul.bf16.gmra.mxu0 %v594
          %v640 = vpop.f32.mrf.mxu0
          %v641 = vadd.f32 %v505, %v640
          %v642 = vpop.f32.mrf.mxu0
          %v643 = vadd.f32 %v505, %v642
          %644 = vdwg.mxu0
          %v645 = vtanh.pop %v606
          %v646 = vtanh.pop %v608
          %v647 = vtanh.pop %v611
          %v648 = vtanh.pop %v613
          %v649 = vtanh.pop %v616
          %v650 = vtanh.pop %v618
          %v651 = vtanh.pop %v621
          %v652 = vtanh.pop %v623
          %v653 = vtanh.pop %v626
          %v654 = vtanh.pop %v628
          %v655 = vtanh.pop %v631
          %v656 = vtanh.pop %v633
          %v657 = vtanh.pop %v636
          %v658 = vtanh.pop %v638
          %v659 = vtanh.pop %v641
          %v660 = vtanh.pop %v643
          %v661 = vpack.c.bf16 %v645, %v645
          %v662 = vpack.c.bf16 %v646, %v646
          %v663 = vpack.c.bf16 %v647, %v647
          %v664 = vpack.c.bf16 %v648, %v648
          %v665 = vpack.c.bf16 %v649, %v649
          %v666 = vpack.c.bf16 %v650, %v650
          %v667 = vpack.c.bf16 %v651, %v651
          %v668 = vpack.c.bf16 %v652, %v652
          %v669 = vpack.c.bf16 %v653, %v653
          %v670 = vpack.c.bf16 %v654, %v654
          %v671 = vpack.c.bf16 %v655, %v655
          %v672 = vpack.c.bf16 %v656, %v656
          %v673 = vpack.c.bf16 %v657, %v657
          %v674 = vpack.c.bf16 %v658, %v658
          %v675 = vpack.c.bf16 %v659, %v659
          %v676 = vpack.c.bf16 %v660, %v660
          %677 = vst [vmem:[#allocation2] sm:$0xf] %v661
          %678 = vst [vmem:[#allocation2 + $0x4] sm:$0xf] %v662
          %679 = vst [vmem:[#allocation2 + $0x8] sm:$0xf] %v663
          %680 = vst [vmem:[#allocation2 + $0xc] sm:$0xf] %v664
          %681 = vst [vmem:[#allocation2 + $0x10] sm:$0xf] %v665
          %682 = vst [vmem:[#allocation2 + $0x14] sm:$0xf] %v666
          %683 = vst [vmem:[#allocation2 + $0x18] sm:$0xf] %v667
          %684 = vst [vmem:[#allocation2 + $0x1c] sm:$0xf] %v668
          %685 = vst [vmem:[#allocation2 + $0x20] sm:$0xf] %v669
          %686 = vst [vmem:[#allocation2 + $0x24] sm:$0xf] %v670
          %687 = vst [vmem:[#allocation2 + $0x28] sm:$0xf] %v671
          %688 = vst [vmem:[#allocation2 + $0x2c] sm:$0xf] %v672
          %689 = vst [vmem:[#allocation2 + $0x30] sm:$0xf] %v673
          %690 = vst [vmem:[#allocation2 + $0x34] sm:$0xf] %v674
          %691 = vst [vmem:[#allocation2 + $0x38] sm:$0xf] %v675
          %692 = vst [vmem:[#allocation2 + $0x3c] sm:$0xf] %v676
          %vm693 = vcmask 7168
          %694 = vst.msk [vmem:[#allocation3] sm:$0xff] %vm693, -inf
          %695 = vst.msk [vmem:[#allocation3 + $0x8] sm:$0xff] %vm693, -inf
          %696 = vst.msk [vmem:[#allocation3 + $0x10] sm:$0xff] %vm693, -inf
          %697 = vst.msk [vmem:[#allocation3 + $0x18] sm:$0xff] %vm693, -inf
          %698 = vst.msk [vmem:[#allocation3 + $0x20] sm:$0xff] %vm693, -inf
          %699 = vst.msk [vmem:[#allocation3 + $0x28] sm:$0xff] %vm693, -inf
          %700 = vst.msk [vmem:[#allocation3 + $0x30] sm:$0xff] %vm693, -inf
          %701 = vst.msk [vmem:[#allocation3 + $0x38] sm:$0xff] %vm693, -inf
          %702 = vst.msk [vmem:[#allocation3 + $0x40] sm:$0xff] %vm693, -inf
          %703 = vst.msk [vmem:[#allocation3 + $0x48] sm:$0xff] %vm693, -inf
          %704 = vst.msk [vmem:[#allocation3 + $0x50] sm:$0xff] %vm693, -inf
          %705 = vst.msk [vmem:[#allocation3 + $0x58] sm:$0xff] %vm693, -inf
          %706 = vst.msk [vmem:[#allocation3 + $0x60] sm:$0xff] %vm693, -inf
          %707 = vst.msk [vmem:[#allocation3 + $0x68] sm:$0xff] %vm693, -inf
          %708 = vst.msk [vmem:[#allocation3 + $0x70] sm:$0xff] %vm693, -inf
          %709 = vst.msk [vmem:[#allocation3 + $0x78] sm:$0xff] %vm693, -inf
          %710 = vst.msk [vmem:[#allocation4] sm:$0xff] %vm693, 0.0
          %711 = vst.msk [vmem:[#allocation4 + $0x8] sm:$0xff] %vm693, 0.0
          %712 = vst.msk [vmem:[#allocation4 + $0x10] sm:$0xff] %vm693, 0.0
          %713 = vst.msk [vmem:[#allocation4 + $0x18] sm:$0xff] %vm693, 0.0
          %714 = vst.msk [vmem:[#allocation4 + $0x20] sm:$0xff] %vm693, 0.0
          %715 = vst.msk [vmem:[#allocation4 + $0x28] sm:$0xff] %vm693, 0.0
          %716 = vst.msk [vmem:[#allocation4 + $0x30] sm:$0xff] %vm693, 0.0
          %717 = vst.msk [vmem:[#allocation4 + $0x38] sm:$0xff] %vm693, 0.0
          %718 = vst.msk [vmem:[#allocation4 + $0x40] sm:$0xff] %vm693, 0.0
          %719 = vst.msk [vmem:[#allocation4 + $0x48] sm:$0xff] %vm693, 0.0
          %720 = vst.msk [vmem:[#allocation4 + $0x50] sm:$0xff] %vm693, 0.0
          %721 = vst.msk [vmem:[#allocation4 + $0x58] sm:$0xff] %vm693, 0.0
          %722 = vst.msk [vmem:[#allocation4 + $0x60] sm:$0xff] %vm693, 0.0
          %723 = vst.msk [vmem:[#allocation4 + $0x68] sm:$0xff] %vm693, 0.0
          %724 = vst.msk [vmem:[#allocation4 + $0x70] sm:$0xff] %vm693, 0.0
          %725 = vst.msk [vmem:[#allocation4 + $0x78] sm:$0xff] %vm693, 0.0
          %726 = vst.msk [vmem:[#allocation5] sm:$0xff] %vm693, 0.0
          %727 = vst.msk [vmem:[#allocation5 + $0x8] sm:$0xff] %vm693, 0.0
          %728 = vst.msk [vmem:[#allocation5 + $0x10] sm:$0xff] %vm693, 0.0
          %729 = vst.msk [vmem:[#allocation5 + $0x18] sm:$0xff] %vm693, 0.0
          %730 = vst.msk [vmem:[#allocation5 + $0x20] sm:$0xff] %vm693, 0.0
          %731 = vst.msk [vmem:[#allocation5 + $0x28] sm:$0xff] %vm693, 0.0
          %732 = vst.msk [vmem:[#allocation5 + $0x30] sm:$0xff] %vm693, 0.0
          %733 = vst.msk [vmem:[#allocation5 + $0x38] sm:$0xff] %vm693, 0.0
          %734 = vst.msk [vmem:[#allocation5 + $0x40] sm:$0xff] %vm693, 0.0
          %735 = vst.msk [vmem:[#allocation5 + $0x48] sm:$0xff] %vm693, 0.0
          %736 = vst.msk [vmem:[#allocation5 + $0x50] sm:$0xff] %vm693, 0.0
          %737 = vst.msk [vmem:[#allocation5 + $0x58] sm:$0xff] %vm693, 0.0
          %738 = vst.msk [vmem:[#allocation5 + $0x60] sm:$0xff] %vm693, 0.0
          %739 = vst.msk [vmem:[#allocation5 + $0x68] sm:$0xff] %vm693, 0.0
          %740 = vst.msk [vmem:[#allocation5 + $0x70] sm:$0xff] %vm693, 0.0
          %741 = vst.msk [vmem:[#allocation5 + $0x78] sm:$0xff] %vm693, 0.0
        $region90: #{trf_lm_trainer_forward.1} parent=81 // pred_fallthru
          _
        %v742 = vld [vmem:[#allocation2] sm:$0xf]
        %v743 = vld [vmem:[#allocation2 + $0x4] sm:$0xf]
        %v744 = vld [vmem:[#allocation2 + $0x8] sm:$0xf]
        %v745 = vld [vmem:[#allocation2 + $0xc] sm:$0xf]
        %v746 = vld [vmem:[#allocation2 + $0x10] sm:$0xf]
        %v747 = vld [vmem:[#allocation2 + $0x14] sm:$0xf]
        %v748 = vld [vmem:[#allocation2 + $0x18] sm:$0xf]
        %v749 = vld [vmem:[#allocation2 + $0x1c] sm:$0xf]
        %v750 = vld [vmem:[#allocation2 + $0x20] sm:$0xf]
        %v751 = vld [vmem:[#allocation2 + $0x24] sm:$0xf]
        %v752 = vld [vmem:[#allocation2 + $0x28] sm:$0xf]
        %v753 = vld [vmem:[#allocation2 + $0x2c] sm:$0xf]
        %v754 = vld [vmem:[#allocation2 + $0x30] sm:$0xf]
        %v755 = vld [vmem:[#allocation2 + $0x34] sm:$0xf]
        %v756 = vld [vmem:[#allocation2 + $0x38] sm:$0xf]
        %v757 = vld [vmem:[#allocation2 + $0x3c] sm:$0xf]
        %v758 = vld [vmem:[%s396] sm:$0xff]
        %v759 = vld [vmem:[%s396 + $0x8] sm:$0xff]
        %v760 = vld [vmem:[%s396 + $0x10] sm:$0xff]
        %v761 = vld [vmem:[%s396 + $0x18] sm:$0xff]
        %v762 = vld [vmem:[%s396 + $0x20] sm:$0xff]
        %v763 = vld [vmem:[%s396 + $0x28] sm:$0xff]
        %v764 = vld [vmem:[%s396 + $0x30] sm:$0xff]
        %v765 = vld [vmem:[%s396 + $0x38] sm:$0xff]
        %v766 = vld [vmem:[%s396 + $0x40] sm:$0xff]
        %v767 = vld [vmem:[%s396 + $0x48] sm:$0xff]
        %v768 = vld [vmem:[%s396 + $0x50] sm:$0xff]
        %v769 = vld [vmem:[%s396 + $0x58] sm:$0xff]
        %v770 = vld [vmem:[%s396 + $0x60] sm:$0xff]
        %v771 = vld [vmem:[%s396 + $0x68] sm:$0xff]
        %v772 = vld [vmem:[%s396 + $0x70] sm:$0xff]
        %v773 = vld [vmem:[%s396 + $0x78] sm:$0xff]
        %v774 = vld [vmem:[%s454] sm:$0x3]
        %v776 = vperm.slane %v774, 0
        %v777 = vperm.slane %v774, 1
        %v796 = vunpack.c.l.b16 %v742
        %v797 = vunpack.c.l.b16 %v743
        %v798 = vunpack.c.l.b16 %v744
        %v799 = vunpack.c.l.b16 %v745
        %v800 = vunpack.c.l.b16 %v746
        %v801 = vunpack.c.l.b16 %v747
        %v802 = vunpack.c.l.b16 %v748
        %v803 = vunpack.c.l.b16 %v749
        %v804 = vunpack.c.l.b16 %v750
        %v805 = vunpack.c.l.b16 %v751
        %v806 = vunpack.c.l.b16 %v752
        %v807 = vunpack.c.l.b16 %v753
        %v808 = vunpack.c.l.b16 %v754
        %v809 = vunpack.c.l.b16 %v755
        %v810 = vunpack.c.l.b16 %v756
        %v811 = vunpack.c.l.b16 %v757
        %v812 = vpack.c.b16 %v797, %v796
        %v813 = vpack.c.b16 %v799, %v798
        %v814 = vpack.c.b16 %v801, %v800
        %v815 = vpack.c.b16 %v803, %v802
        %v816 = vpack.c.b16 %v805, %v804
        %v817 = vpack.c.b16 %v807, %v806
        %v818 = vpack.c.b16 %v809, %v808
        %v819 = vpack.c.b16 %v811, %v810
        %v844 = vunpack.c.l.b16 %v758
        %v845 = vunpack.c.h.b16 %v758
        %v846 = vunpack.c.l.b16 %v759
        %v847 = vunpack.c.h.b16 %v759
        %v848 = vunpack.c.l.b16 %v760
        %v849 = vunpack.c.h.b16 %v760
        %v850 = vunpack.c.l.b16 %v761
        %v851 = vunpack.c.h.b16 %v761
        %v852 = vunpack.c.l.b16 %v762
        %v853 = vunpack.c.h.b16 %v762
        %v854 = vunpack.c.l.b16 %v763
        %v855 = vunpack.c.h.b16 %v763
        %v856 = vunpack.c.l.b16 %v764
        %v857 = vunpack.c.h.b16 %v764
        %v858 = vunpack.c.l.b16 %v765
        %v859 = vunpack.c.h.b16 %v765
        %v860 = vunpack.c.l.b16 %v766
        %v861 = vunpack.c.h.b16 %v766
        %v862 = vunpack.c.l.b16 %v767
        %v863 = vunpack.c.h.b16 %v767
        %v864 = vunpack.c.l.b16 %v768
        %v865 = vunpack.c.h.b16 %v768
        %v866 = vunpack.c.l.b16 %v769
        %v867 = vunpack.c.h.b16 %v769
        %v868 = vunpack.c.l.b16 %v770
        %v869 = vunpack.c.h.b16 %v770
        %v870 = vunpack.c.l.b16 %v771
        %v871 = vunpack.c.h.b16 %v771
        %v872 = vunpack.c.l.b16 %v772
        %v873 = vunpack.c.h.b16 %v772
        %v874 = vunpack.c.l.b16 %v773
        %v875 = vunpack.c.h.b16 %v773
        %v876 = vpack.c.b16 %v846, %v844
        %v877 = vpack.c.b16 %v847, %v845
        %v878 = vpack.c.b16 %v850, %v848
        %v879 = vpack.c.b16 %v851, %v849
        %v880 = vpack.c.b16 %v854, %v852
        %v881 = vpack.c.b16 %v855, %v853
        %v882 = vpack.c.b16 %v858, %v856
        %v883 = vpack.c.b16 %v859, %v857
        %v884 = vpack.c.b16 %v862, %v860
        %v885 = vpack.c.b16 %v863, %v861
        %v886 = vpack.c.b16 %v866, %v864
        %v887 = vpack.c.b16 %v867, %v865
        %v888 = vpack.c.b16 %v870, %v868
        %v889 = vpack.c.b16 %v871, %v869
        %v890 = vpack.c.b16 %v874, %v872
        %v891 = vpack.c.b16 %v875, %v873
        %908 = vmatpush.bf16.msra.mxu0 %v890
        %909 = vmatpush.bf16.msra.mxu0 %v888
        %910 = vmatpush.bf16.msra.mxu0 %v886
        %911 = vmatpush.bf16.msra.mxu0 %v884
        %912 = vmatpush.bf16.msra.mxu0 %v882
        %913 = vmatpush.bf16.msra.mxu0 %v880
        %914 = vmatpush.bf16.msra.mxu0 %v878
        %915 = vmatpush.bf16.msra.mxu0 %v876
        %916 = vmatmul.bf16.gmra.mxu0 %v812
        %v917 = vpop.f32.mrf.mxu0
        %v918 = vadd.f32 %v776, %v917
        %v919 = vpop.f32.mrf.mxu0
        %v920 = vadd.f32 %v776, %v919
        %921 = vmatmul.bf16.gmra.mxu0 %v813
        %v922 = vpop.f32.mrf.mxu0
        %v923 = vadd.f32 %v776, %v922
        %v924 = vpop.f32.mrf.mxu0
        %v925 = vadd.f32 %v776, %v924
        %926 = vmatmul.bf16.gmra.mxu0 %v814
        %v927 = vpop.f32.mrf.mxu0
        %v928 = vadd.f32 %v776, %v927
        %v929 = vpop.f32.mrf.mxu0
        %v930 = vadd.f32 %v776, %v929
        %931 = vmatmul.bf16.gmra.mxu0 %v815
        %v932 = vpop.f32.mrf.mxu0
        %v933 = vadd.f32 %v776, %v932
        %v934 = vpop.f32.mrf.mxu0
        %v935 = vadd.f32 %v776, %v934
        %936 = vmatmul.bf16.gmra.mxu0 %v816
        %v937 = vpop.f32.mrf.mxu0
        %v938 = vadd.f32 %v776, %v937
        %v939 = vpop.f32.mrf.mxu0
        %v940 = vadd.f32 %v776, %v939
        %941 = vmatmul.bf16.gmra.mxu0 %v817
        %v942 = vpop.f32.mrf.mxu0
        %v943 = vadd.f32 %v776, %v942
        %v944 = vpop.f32.mrf.mxu0
        %v945 = vadd.f32 %v776, %v944
        %946 = vmatmul.bf16.gmra.mxu0 %v818
        %v947 = vpop.f32.mrf.mxu0
        %v948 = vadd.f32 %v776, %v947
        %v949 = vpop.f32.mrf.mxu0
        %v950 = vadd.f32 %v776, %v949
        %951 = vmatmul.bf16.gmra.mxu0 %v819
        %v952 = vpop.f32.mrf.mxu0
        %v953 = vadd.f32 %v776, %v952
        %v954 = vpop.f32.mrf.mxu0
        %v955 = vadd.f32 %v776, %v954
        %956 = vdwg.mxu0
        %957 = vmatpush.bf16.msra.mxu0 %v891
        %958 = vmatpush.bf16.msra.mxu0 %v889
        %959 = vmatpush.bf16.msra.mxu0 %v887
        %960 = vmatpush.bf16.msra.mxu0 %v885
        %961 = vmatpush.bf16.msra.mxu0 %v883
        %962 = vmatpush.bf16.msra.mxu0 %v881
        %963 = vmatpush.bf16.msra.mxu0 %v879
        %964 = vmatpush.bf16.msra.mxu0 %v877
        %965 = vmatmul.bf16.gmra.mxu0 %v812
        %v966 = vpop.f32.mrf.mxu0
        %v967 = vadd.f32 %v777, %v966
        %v968 = vpop.f32.mrf.mxu0
        %v969 = vadd.f32 %v777, %v968
        %970 = vmatmul.bf16.gmra.mxu0 %v813
        %v971 = vpop.f32.mrf.mxu0
        %v972 = vadd.f32 %v777, %v971
        %v973 = vpop.f32.mrf.mxu0
        %v974 = vadd.f32 %v777, %v973
        %975 = vmatmul.bf16.gmra.mxu0 %v814
        %v976 = vpop.f32.mrf.mxu0
        %v977 = vadd.f32 %v777, %v976
        %v978 = vpop.f32.mrf.mxu0
        %v979 = vadd.f32 %v777, %v978
        %980 = vmatmul.bf16.gmra.mxu0 %v815
        %v981 = vpop.f32.mrf.mxu0
        %v982 = vadd.f32 %v777, %v981
        %v983 = vpop.f32.mrf.mxu0
        %v984 = vadd.f32 %v777, %v983
        %985 = vmatmul.bf16.gmra.mxu0 %v816
        %v986 = vpop.f32.mrf.mxu0
        %v987 = vadd.f32 %v777, %v986
        %v988 = vpop.f32.mrf.mxu0
        %v989 = vadd.f32 %v777, %v988
        %990 = vmatmul.bf16.gmra.mxu0 %v817
        %v991 = vpop.f32.mrf.mxu0
        %v992 = vadd.f32 %v777, %v991
        %v993 = vpop.f32.mrf.mxu0
        %v994 = vadd.f32 %v777, %v993
        %995 = vmatmul.bf16.gmra.mxu0 %v818
        %v996 = vpop.f32.mrf.mxu0
        %v997 = vadd.f32 %v777, %v996
        %v998 = vpop.f32.mrf.mxu0
        %v999 = vadd.f32 %v777, %v998
        %1000 = vmatmul.bf16.gmra.mxu0 %v819
        %v1001 = vpop.f32.mrf.mxu0
        %v1002 = vadd.f32 %v777, %v1001
        %v1003 = vpop.f32.mrf.mxu0
        %v1004 = vadd.f32 %v777, %v1003
        %1005 = vdwg.mxu0
        %v1006 = vld [vmem:[#allocation3] sm:$0xff]
        %v1007 = vld [vmem:[#allocation3 + $0x8] sm:$0xff]
        %v1008 = vld [vmem:[#allocation3 + $0x10] sm:$0xff]
        %v1009 = vld [vmem:[#allocation3 + $0x18] sm:$0xff]
        %v1010 = vld [vmem:[#allocation3 + $0x20] sm:$0xff]
        %v1011 = vld [vmem:[#allocation3 + $0x28] sm:$0xff]
        %v1012 = vld [vmem:[#allocation3 + $0x30] sm:$0xff]
        %v1013 = vld [vmem:[#allocation3 + $0x38] sm:$0xff]
        %v1014 = vld [vmem:[#allocation3 + $0x40] sm:$0xff]
        %v1015 = vld [vmem:[#allocation3 + $0x48] sm:$0xff]
        %v1016 = vld [vmem:[#allocation3 + $0x50] sm:$0xff]
        %v1017 = vld [vmem:[#allocation3 + $0x58] sm:$0xff]
        %v1018 = vld [vmem:[#allocation3 + $0x60] sm:$0xff]
        %v1019 = vld [vmem:[#allocation3 + $0x68] sm:$0xff]
        %v1020 = vld [vmem:[#allocation3 + $0x70] sm:$0xff]
        %v1021 = vld [vmem:[#allocation3 + $0x78] sm:$0xff]
        %v1022 = vmax.f32 %v918, %v967
        %1023 = vmax.xlane.f32.xlu0 %v1022
        %v1024 = vpop.xlane.xlu0 %1023
        %v1025 = vmax.f32 %v920, %v969
        %1026 = vmax.xlane.f32.xlu0 %v1025
        %v1027 = vpop.xlane.xlu0 %1026
        %v1028 = vmax.f32 %v923, %v972
        %1029 = vmax.xlane.f32.xlu0 %v1028
        %v1030 = vpop.xlane.xlu0 %1029
        %v1031 = vmax.f32 %v925, %v974
        %1032 = vmax.xlane.f32.xlu0 %v1031
        %v1033 = vpop.xlane.xlu0 %1032
        %v1034 = vmax.f32 %v928, %v977
        %1035 = vmax.xlane.f32.xlu0 %v1034
        %v1036 = vpop.xlane.xlu0 %1035
        %v1037 = vmax.f32 %v930, %v979
        %1038 = vmax.xlane.f32.xlu0 %v1037
        %v1039 = vpop.xlane.xlu0 %1038
        %v1040 = vmax.f32 %v933, %v982
        %1041 = vmax.xlane.f32.xlu0 %v1040
        %v1042 = vpop.xlane.xlu0 %1041
        %v1043 = vmax.f32 %v935, %v984
        %1044 = vmax.xlane.f32.xlu0 %v1043
        %v1045 = vpop.xlane.xlu0 %1044
        %v1046 = vmax.f32 %v938, %v987
        %1047 = vmax.xlane.f32.xlu0 %v1046
        %v1048 = vpop.xlane.xlu0 %1047
        %v1049 = vmax.f32 %v940, %v989
        %1050 = vmax.xlane.f32.xlu0 %v1049
        %v1051 = vpop.xlane.xlu0 %1050
        %v1052 = vmax.f32 %v943, %v992
        %1053 = vmax.xlane.f32.xlu0 %v1052
        %v1054 = vpop.xlane.xlu0 %1053
        %v1055 = vmax.f32 %v945, %v994
        %1056 = vmax.xlane.f32.xlu0 %v1055
        %v1057 = vpop.xlane.xlu0 %1056
        %v1058 = vmax.f32 %v948, %v997
        %1059 = vmax.xlane.f32.xlu0 %v1058
        %v1060 = vpop.xlane.xlu0 %1059
        %v1061 = vmax.f32 %v950, %v999
        %1062 = vmax.xlane.f32.xlu0 %v1061
        %v1063 = vpop.xlane.xlu0 %1062
        %v1064 = vmax.f32 %v953, %v1002
        %1065 = vmax.xlane.f32.xlu0 %v1064
        %v1066 = vpop.xlane.xlu0 %1065
        %v1067 = vmax.f32 %v955, %v1004
        %1068 = vmax.xlane.f32.xlu0 %v1067
        %v1069 = vpop.xlane.xlu0 %1068
        %v1070 = vmax.f32 %v1006, %v1024
        %v1071 = vmax.f32 %v1007, %v1027
        %v1072 = vmax.f32 %v1008, %v1030
        %v1073 = vmax.f32 %v1009, %v1033
        %v1074 = vmax.f32 %v1010, %v1036
        %v1075 = vmax.f32 %v1011, %v1039
        %v1076 = vmax.f32 %v1012, %v1042
        %v1077 = vmax.f32 %v1013, %v1045
        %v1078 = vmax.f32 %v1014, %v1048
        %v1079 = vmax.f32 %v1015, %v1051
        %v1080 = vmax.f32 %v1016, %v1054
        %v1081 = vmax.f32 %v1017, %v1057
        %v1082 = vmax.f32 %v1018, %v1060
        %v1083 = vmax.f32 %v1019, %v1063
        %v1084 = vmax.f32 %v1020, %v1066
        %v1085 = vmax.f32 %v1021, %v1069
        %v1086 = vld [vmem:[#allocation4] sm:$0xff]
        %v1087 = vld [vmem:[#allocation4 + $0x8] sm:$0xff]
        %v1088 = vld [vmem:[#allocation4 + $0x10] sm:$0xff]
        %v1089 = vld [vmem:[#allocation4 + $0x18] sm:$0xff]
        %v1090 = vld [vmem:[#allocation4 + $0x20] sm:$0xff]
        %v1091 = vld [vmem:[#allocation4 + $0x28] sm:$0xff]
        %v1092 = vld [vmem:[#allocation4 + $0x30] sm:$0xff]
        %v1093 = vld [vmem:[#allocation4 + $0x38] sm:$0xff]
        %v1094 = vld [vmem:[#allocation4 + $0x40] sm:$0xff]
        %v1095 = vld [vmem:[#allocation4 + $0x48] sm:$0xff]
        %v1096 = vld [vmem:[#allocation4 + $0x50] sm:$0xff]
        %v1097 = vld [vmem:[#allocation4 + $0x58] sm:$0xff]
        %v1098 = vld [vmem:[#allocation4 + $0x60] sm:$0xff]
        %v1099 = vld [vmem:[#allocation4 + $0x68] sm:$0xff]
        %v1100 = vld [vmem:[#allocation4 + $0x70] sm:$0xff]
        %v1101 = vld [vmem:[#allocation4 + $0x78] sm:$0xff]
        %v1102 = vsub.f32 %v1006, %v1070
        %v1103 = vsub.f32 %v1007, %v1071
        %v1104 = vsub.f32 %v1008, %v1072
        %v1105 = vsub.f32 %v1009, %v1073
        %v1106 = vsub.f32 %v1010, %v1074
        %v1107 = vsub.f32 %v1011, %v1075
        %v1108 = vsub.f32 %v1012, %v1076
        %v1109 = vsub.f32 %v1013, %v1077
        %v1110 = vsub.f32 %v1014, %v1078
        %v1111 = vsub.f32 %v1015, %v1079
        %v1112 = vsub.f32 %v1016, %v1080
        %v1113 = vsub.f32 %v1017, %v1081
        %v1114 = vsub.f32 %v1018, %v1082
        %v1115 = vsub.f32 %v1019, %v1083
        %v1116 = vsub.f32 %v1020, %v1084
        %v1117 = vsub.f32 %v1021, %v1085
        %v1118 = vmul.f32 %v1102, 1.442695
        %v1119 = vpow.pop %v1118
        %v1120 = vmul.f32 %v1103, 1.442695
        %v1121 = vpow.pop %v1120
        %v1122 = vmul.f32 %v1104, 1.442695
        %v1123 = vpow.pop %v1122
        %v1124 = vmul.f32 %v1105, 1.442695
        %v1125 = vpow.pop %v1124
        %v1126 = vmul.f32 %v1106, 1.442695
        %v1127 = vpow.pop %v1126
        %v1128 = vmul.f32 %v1107, 1.442695
        %v1129 = vpow.pop %v1128
        %v1130 = vmul.f32 %v1108, 1.442695
        %v1131 = vpow.pop %v1130
        %v1132 = vmul.f32 %v1109, 1.442695
        %v1133 = vpow.pop %v1132
        %v1134 = vmul.f32 %v1110, 1.442695
        %v1135 = vpow.pop %v1134
        %v1136 = vmul.f32 %v1111, 1.442695
        %v1137 = vpow.pop %v1136
        %v1138 = vmul.f32 %v1112, 1.442695
        %v1139 = vpow.pop %v1138
        %v1140 = vmul.f32 %v1113, 1.442695
        %v1141 = vpow.pop %v1140
        %v1142 = vmul.f32 %v1114, 1.442695
        %v1143 = vpow.pop %v1142
        %v1144 = vmul.f32 %v1115, 1.442695
        %v1145 = vpow.pop %v1144
        %v1146 = vmul.f32 %v1116, 1.442695
        %v1147 = vpow.pop %v1146
        %v1148 = vmul.f32 %v1117, 1.442695
        %v1149 = vpow.pop %v1148
        %v1150 = vmul.f32 %v1086, %v1119
        %v1151 = vmul.f32 %v1087, %v1121
        %v1152 = vmul.f32 %v1088, %v1123
        %v1153 = vmul.f32 %v1089, %v1125
        %v1154 = vmul.f32 %v1090, %v1127
        %v1155 = vmul.f32 %v1091, %v1129
        %v1156 = vmul.f32 %v1092, %v1131
        %v1157 = vmul.f32 %v1093, %v1133
        %v1158 = vmul.f32 %v1094, %v1135
        %v1159 = vmul.f32 %v1095, %v1137
        %v1160 = vmul.f32 %v1096, %v1139
        %v1161 = vmul.f32 %v1097, %v1141
        %v1162 = vmul.f32 %v1098, %v1143
        %v1163 = vmul.f32 %v1099, %v1145
        %v1164 = vmul.f32 %v1100, %v1147
        %v1165 = vmul.f32 %v1101, %v1149
        %1167 = vset.pattern.permute.xlu0 0
        %1168 = vperm.xlu0 %1167, %v1070
        %v1169 = vpop.permute.xlu0 %1168
        %1172 = vset.pattern.permute.xlu0 0
        %1173 = vperm.xlu0 %1172, %v1071
        %v1174 = vpop.permute.xlu0 %1173
        %1177 = vset.pattern.permute.xlu0 0
        %1178 = vperm.xlu0 %1177, %v1072
        %v1179 = vpop.permute.xlu0 %1178
        %1182 = vset.pattern.permute.xlu0 0
        %1183 = vperm.xlu0 %1182, %v1073
        %v1184 = vpop.permute.xlu0 %1183
        %1187 = vset.pattern.permute.xlu0 0
        %1188 = vperm.xlu0 %1187, %v1074
        %v1189 = vpop.permute.xlu0 %1188
        %1192 = vset.pattern.permute.xlu0 0
        %1193 = vperm.xlu0 %1192, %v1075
        %v1194 = vpop.permute.xlu0 %1193
        %1197 = vset.pattern.permute.xlu0 0
        %1198 = vperm.xlu0 %1197, %v1076
        %v1199 = vpop.permute.xlu0 %1198
        %1202 = vset.pattern.permute.xlu0 0
        %1203 = vperm.xlu0 %1202, %v1077
        %v1204 = vpop.permute.xlu0 %1203
        %1207 = vset.pattern.permute.xlu0 0
        %1208 = vperm.xlu0 %1207, %v1078
        %v1209 = vpop.permute.xlu0 %1208
        %1212 = vset.pattern.permute.xlu0 0
        %1213 = vperm.xlu0 %1212, %v1079
        %v1214 = vpop.permute.xlu0 %1213
        %1217 = vset.pattern.permute.xlu0 0
        %1218 = vperm.xlu0 %1217, %v1080
        %v1219 = vpop.permute.xlu0 %1218
        %1222 = vset.pattern.permute.xlu0 0
        %1223 = vperm.xlu0 %1222, %v1081
        %v1224 = vpop.permute.xlu0 %1223
        %1227 = vset.pattern.permute.xlu0 0
        %1228 = vperm.xlu0 %1227, %v1082
        %v1229 = vpop.permute.xlu0 %1228
        %1232 = vset.pattern.permute.xlu0 0
        %1233 = vperm.xlu0 %1232, %v1083
        %v1234 = vpop.permute.xlu0 %1233
        %1237 = vset.pattern.permute.xlu0 0
        %1238 = vperm.xlu0 %1237, %v1084
        %v1239 = vpop.permute.xlu0 %1238
        %1242 = vset.pattern.permute.xlu0 0
        %1243 = vperm.xlu0 %1242, %v1085
        %v1244 = vpop.permute.xlu0 %1243
        %v1246 = vsub.f32 %v918, %v1169
        %v1247 = vsub.f32 %v967, %v1169
        %v1248 = vsub.f32 %v920, %v1174
        %v1249 = vsub.f32 %v969, %v1174
        %v1250 = vsub.f32 %v923, %v1179
        %v1251 = vsub.f32 %v972, %v1179
        %v1252 = vsub.f32 %v925, %v1184
        %v1253 = vsub.f32 %v974, %v1184
        %v1254 = vsub.f32 %v928, %v1189
        %v1255 = vsub.f32 %v977, %v1189
        %v1256 = vsub.f32 %v930, %v1194
        %v1257 = vsub.f32 %v979, %v1194
        %v1258 = vsub.f32 %v933, %v1199
        %v1259 = vsub.f32 %v982, %v1199
        %v1260 = vsub.f32 %v935, %v1204
        %v1261 = vsub.f32 %v984, %v1204
        %v1262 = vsub.f32 %v938, %v1209
        %v1263 = vsub.f32 %v987, %v1209
        %v1264 = vsub.f32 %v940, %v1214
        %v1265 = vsub.f32 %v989, %v1214
        %v1266 = vsub.f32 %v943, %v1219
        %v1267 = vsub.f32 %v992, %v1219
        %v1268 = vsub.f32 %v945, %v1224
        %v1269 = vsub.f32 %v994, %v1224
        %v1270 = vsub.f32 %v948, %v1229
        %v1271 = vsub.f32 %v997, %v1229
        %v1272 = vsub.f32 %v950, %v1234
        %v1273 = vsub.f32 %v999, %v1234
        %v1274 = vsub.f32 %v953, %v1239
        %v1275 = vsub.f32 %v1002, %v1239
        %v1276 = vsub.f32 %v955, %v1244
        %v1277 = vsub.f32 %v1004, %v1244
        %v1278 = vmul.f32 %v1246, 1.442695
        %v1279 = vpow.pop %v1278
        %v1280 = vmul.f32 %v1247, 1.442695
        %v1281 = vpow.pop %v1280
        %v1282 = vmul.f32 %v1248, 1.442695
        %v1283 = vpow.pop %v1282
        %v1284 = vmul.f32 %v1249, 1.442695
        %v1285 = vpow.pop %v1284
        %v1286 = vmul.f32 %v1250, 1.442695
        %v1287 = vpow.pop %v1286
        %v1288 = vmul.f32 %v1251, 1.442695
        %v1289 = vpow.pop %v1288
        %v1290 = vmul.f32 %v1252, 1.442695
        %v1291 = vpow.pop %v1290
        %v1292 = vmul.f32 %v1253, 1.442695
        %v1293 = vpow.pop %v1292
        %v1294 = vmul.f32 %v1254, 1.442695
        %v1295 = vpow.pop %v1294
        %v1296 = vmul.f32 %v1255, 1.442695
        %v1297 = vpow.pop %v1296
        %v1298 = vmul.f32 %v1256, 1.442695
        %v1299 = vpow.pop %v1298
        %v1300 = vmul.f32 %v1257, 1.442695
        %v1301 = vpow.pop %v1300
        %v1302 = vmul.f32 %v1258, 1.442695
        %v1303 = vpow.pop %v1302
        %v1304 = vmul.f32 %v1259, 1.442695
        %v1305 = vpow.pop %v1304
        %v1306 = vmul.f32 %v1260, 1.442695
        %v1307 = vpow.pop %v1306
        %v1308 = vmul.f32 %v1261, 1.442695
        %v1309 = vpow.pop %v1308
        %v1310 = vmul.f32 %v1262, 1.442695
        %v1311 = vpow.pop %v1310
        %v1312 = vmul.f32 %v1263, 1.442695
        %v1313 = vpow.pop %v1312
        %v1314 = vmul.f32 %v1264, 1.442695
        %v1315 = vpow.pop %v1314
        %v1316 = vmul.f32 %v1265, 1.442695
        %v1317 = vpow.pop %v1316
        %v1318 = vmul.f32 %v1266, 1.442695
        %v1319 = vpow.pop %v1318
        %v1320 = vmul.f32 %v1267, 1.442695
        %v1321 = vpow.pop %v1320
        %v1322 = vmul.f32 %v1268, 1.442695
        %v1323 = vpow.pop %v1322
        %v1324 = vmul.f32 %v1269, 1.442695
        %v1325 = vpow.pop %v1324
        %v1326 = vmul.f32 %v1270, 1.442695
        %v1327 = vpow.pop %v1326
        %v1328 = vmul.f32 %v1271, 1.442695
        %v1329 = vpow.pop %v1328
        %v1330 = vmul.f32 %v1272, 1.442695
        %v1331 = vpow.pop %v1330
        %v1332 = vmul.f32 %v1273, 1.442695
        %v1333 = vpow.pop %v1332
        %v1334 = vmul.f32 %v1274, 1.442695
        %v1335 = vpow.pop %v1334
        %v1336 = vmul.f32 %v1275, 1.442695
        %v1337 = vpow.pop %v1336
        %v1338 = vmul.f32 %v1276, 1.442695
        %v1339 = vpow.pop %v1338
        %v1340 = vmul.f32 %v1277, 1.442695
        %v1341 = vpow.pop %v1340
        %v1342 = vadd.f32 %v1279, %v1281
        %1343 = vadd.xlane.f32.xlu0 %v1342
        %v1344 = vpop.xlane.xlu0 %1343
        %v1345 = vadd.f32 %v1283, %v1285
        %1346 = vadd.xlane.f32.xlu0 %v1345
        %v1347 = vpop.xlane.xlu0 %1346
        %v1348 = vadd.f32 %v1287, %v1289
        %1349 = vadd.xlane.f32.xlu0 %v1348
        %v1350 = vpop.xlane.xlu0 %1349
        %v1351 = vadd.f32 %v1291, %v1293
        %1352 = vadd.xlane.f32.xlu0 %v1351
        %v1353 = vpop.xlane.xlu0 %1352
        %v1354 = vadd.f32 %v1295, %v1297
        %1355 = vadd.xlane.f32.xlu0 %v1354
        %v1356 = vpop.xlane.xlu0 %1355
        %v1357 = vadd.f32 %v1299, %v1301
        %1358 = vadd.xlane.f32.xlu0 %v1357
        %v1359 = vpop.xlane.xlu0 %1358
        %v1360 = vadd.f32 %v1303, %v1305
        %1361 = vadd.xlane.f32.xlu0 %v1360
        %v1362 = vpop.xlane.xlu0 %1361
        %v1363 = vadd.f32 %v1307, %v1309
        %1364 = vadd.xlane.f32.xlu0 %v1363
        %v1365 = vpop.xlane.xlu0 %1364
        %v1366 = vadd.f32 %v1311, %v1313
        %1367 = vadd.xlane.f32.xlu0 %v1366
        %v1368 = vpop.xlane.xlu0 %1367
        %v1369 = vadd.f32 %v1315, %v1317
        %1370 = vadd.xlane.f32.xlu0 %v1369
        %v1371 = vpop.xlane.xlu0 %1370
        %v1372 = vadd.f32 %v1319, %v1321
        %1373 = vadd.xlane.f32.xlu0 %v1372
        %v1374 = vpop.xlane.xlu0 %1373
        %v1375 = vadd.f32 %v1323, %v1325
        %1376 = vadd.xlane.f32.xlu0 %v1375
        %v1377 = vpop.xlane.xlu0 %1376
        %v1378 = vadd.f32 %v1327, %v1329
        %1379 = vadd.xlane.f32.xlu0 %v1378
        %v1380 = vpop.xlane.xlu0 %1379
        %v1381 = vadd.f32 %v1331, %v1333
        %1382 = vadd.xlane.f32.xlu0 %v1381
        %v1383 = vpop.xlane.xlu0 %1382
        %v1384 = vadd.f32 %v1335, %v1337
        %1385 = vadd.xlane.f32.xlu0 %v1384
        %v1386 = vpop.xlane.xlu0 %1385
        %v1387 = vadd.f32 %v1339, %v1341
        %1388 = vadd.xlane.f32.xlu0 %v1387
        %v1389 = vpop.xlane.xlu0 %1388
        %v1390 = vadd.f32 %v1150, %v1344
        %v1391 = vadd.f32 %v1151, %v1347
        %v1392 = vadd.f32 %v1152, %v1350
        %v1393 = vadd.f32 %v1153, %v1353
        %v1394 = vadd.f32 %v1154, %v1356
        %v1395 = vadd.f32 %v1155, %v1359
        %v1396 = vadd.f32 %v1156, %v1362
        %v1397 = vadd.f32 %v1157, %v1365
        %v1398 = vadd.f32 %v1158, %v1368
        %v1399 = vadd.f32 %v1159, %v1371
        %v1400 = vadd.f32 %v1160, %v1374
        %v1401 = vadd.f32 %v1161, %v1377
        %v1402 = vadd.f32 %v1162, %v1380
        %v1403 = vadd.f32 %v1163, %v1383
        %v1404 = vadd.f32 %v1164, %v1386
        %v1405 = vadd.f32 %v1165, %v1389
        %vm1406 = vcmask 7168
        %1407 = vst.msk [vmem:[#allocation4] sm:$0xff] %vm1406, %v1390
        %1408 = vst.msk [vmem:[#allocation4 + $0x8] sm:$0xff] %vm1406, %v1391
        %1409 = vst.msk [vmem:[#allocation4 + $0x10] sm:$0xff] %vm1406, %v1392
        %1410 = vst.msk [vmem:[#allocation4 + $0x18] sm:$0xff] %vm1406, %v1393
        %1411 = vst.msk [vmem:[#allocation4 + $0x20] sm:$0xff] %vm1406, %v1394
        %1412 = vst.msk [vmem:[#allocation4 + $0x28] sm:$0xff] %vm1406, %v1395
        %1413 = vst.msk [vmem:[#allocation4 + $0x30] sm:$0xff] %vm1406, %v1396
        %1414 = vst.msk [vmem:[#allocation4 + $0x38] sm:$0xff] %vm1406, %v1397
        %1415 = vst.msk [vmem:[#allocation4 + $0x40] sm:$0xff] %vm1406, %v1398
        %1416 = vst.msk [vmem:[#allocation4 + $0x48] sm:$0xff] %vm1406, %v1399
        %1417 = vst.msk [vmem:[#allocation4 + $0x50] sm:$0xff] %vm1406, %v1400
        %1418 = vst.msk [vmem:[#allocation4 + $0x58] sm:$0xff] %vm1406, %v1401
        %1419 = vst.msk [vmem:[#allocation4 + $0x60] sm:$0xff] %vm1406, %v1402
        %1420 = vst.msk [vmem:[#allocation4 + $0x68] sm:$0xff] %vm1406, %v1403
        %1421 = vst.msk [vmem:[#allocation4 + $0x70] sm:$0xff] %vm1406, %v1404
        %1422 = vst.msk [vmem:[#allocation4 + $0x78] sm:$0xff] %vm1406, %v1405
        %1423 = vst.msk [vmem:[#allocation3] sm:$0xff] %vm1406, %v1070
        %1424 = vst.msk [vmem:[#allocation3 + $0x8] sm:$0xff] %vm1406, %v1071
        %1425 = vst.msk [vmem:[#allocation3 + $0x10] sm:$0xff] %vm1406, %v1072
        %1426 = vst.msk [vmem:[#allocation3 + $0x18] sm:$0xff] %vm1406, %v1073
        %1427 = vst.msk [vmem:[#allocation3 + $0x20] sm:$0xff] %vm1406, %v1074
        %1428 = vst.msk [vmem:[#allocation3 + $0x28] sm:$0xff] %vm1406, %v1075
        %1429 = vst.msk [vmem:[#allocation3 + $0x30] sm:$0xff] %vm1406, %v1076
        %1430 = vst.msk [vmem:[#allocation3 + $0x38] sm:$0xff] %vm1406, %v1077
        %1431 = vst.msk [vmem:[#allocation3 + $0x40] sm:$0xff] %vm1406, %v1078
        %1432 = vst.msk [vmem:[#allocation3 + $0x48] sm:$0xff] %vm1406, %v1079
        %1433 = vst.msk [vmem:[#allocation3 + $0x50] sm:$0xff] %vm1406, %v1080
        %1434 = vst.msk [vmem:[#allocation3 + $0x58] sm:$0xff] %vm1406, %v1081
        %1435 = vst.msk [vmem:[#allocation3 + $0x60] sm:$0xff] %vm1406, %v1082
        %1436 = vst.msk [vmem:[#allocation3 + $0x68] sm:$0xff] %vm1406, %v1083
        %1437 = vst.msk [vmem:[#allocation3 + $0x70] sm:$0xff] %vm1406, %v1084
        %1438 = vst.msk [vmem:[#allocation3 + $0x78] sm:$0xff] %vm1406, %v1085
        %v1439 = vlaneseq
        %v1440 = vand.u32 %v1439, 127
        %v1441 = vadd.s32 %v1440, 128
        %s1442 = smul.u32 %s23, 256
        %v1443 = vstv %s1442
        %v1444 = vadd.s32 %v1440, %v1443
        %v1445 = vadd.s32 %v1441, %v1443
        %v1446 = vld [vmem:[#allocation5] sm:$0xff]
        %v1447 = vld [vmem:[#allocation5 + $0x8] sm:$0xff]
        %v1448 = vld [vmem:[#allocation5 + $0x10] sm:$0xff]
        %v1449 = vld [vmem:[#allocation5 + $0x18] sm:$0xff]
        %v1450 = vld [vmem:[#allocation5 + $0x20] sm:$0xff]
        %v1451 = vld [vmem:[#allocation5 + $0x28] sm:$0xff]
        %v1452 = vld [vmem:[#allocation5 + $0x30] sm:$0xff]
        %v1453 = vld [vmem:[#allocation5 + $0x38] sm:$0xff]
        %v1454 = vld [vmem:[#allocation5 + $0x40] sm:$0xff]
        %v1455 = vld [vmem:[#allocation5 + $0x48] sm:$0xff]
        %v1456 = vld [vmem:[#allocation5 + $0x50] sm:$0xff]
        %v1457 = vld [vmem:[#allocation5 + $0x58] sm:$0xff]
        %v1458 = vld [vmem:[#allocation5 + $0x60] sm:$0xff]
        %v1459 = vld [vmem:[#allocation5 + $0x68] sm:$0xff]
        %v1460 = vld [vmem:[#allocation5 + $0x70] sm:$0xff]
        %v1461 = vld [vmem:[#allocation5 + $0x78] sm:$0xff]
        %v1462 = vld [vmem:[%s460] sm:$0xff]
        %v1463 = vld [vmem:[%s460 + $0x8] sm:$0xff]
        %v1464 = vld [vmem:[%s460 + $0x10] sm:$0xff]
        %v1465 = vld [vmem:[%s460 + $0x18] sm:$0xff]
        %v1466 = vld [vmem:[%s460 + $0x20] sm:$0xff]
        %v1467 = vld [vmem:[%s460 + $0x28] sm:$0xff]
        %v1468 = vld [vmem:[%s460 + $0x30] sm:$0xff]
        %v1469 = vld [vmem:[%s460 + $0x38] sm:$0xff]
        %v1470 = vld [vmem:[%s460 + $0x40] sm:$0xff]
        %v1471 = vld [vmem:[%s460 + $0x48] sm:$0xff]
        %v1472 = vld [vmem:[%s460 + $0x50] sm:$0xff]
        %v1473 = vld [vmem:[%s460 + $0x58] sm:$0xff]
        %v1474 = vld [vmem:[%s460 + $0x60] sm:$0xff]
        %v1475 = vld [vmem:[%s460 + $0x68] sm:$0xff]
        %v1476 = vld [vmem:[%s460 + $0x70] sm:$0xff]
        %v1477 = vld [vmem:[%s460 + $0x78] sm:$0xff]
        %1478 = vset.pattern.permute.xlu0 0
        %1479 = vperm.xlu0 %1478, %v1462
        %v1480 = vpop.permute.xlu0 %1479
        %1481 = vset.pattern.permute.xlu0 0
        %1482 = vperm.xlu0 %1481, %v1463
        %v1483 = vpop.permute.xlu0 %1482
        %1484 = vset.pattern.permute.xlu0 0
        %1485 = vperm.xlu0 %1484, %v1464
        %v1486 = vpop.permute.xlu0 %1485
        %1487 = vset.pattern.permute.xlu0 0
        %1488 = vperm.xlu0 %1487, %v1465
        %v1489 = vpop.permute.xlu0 %1488
        %1490 = vset.pattern.permute.xlu0 0
        %1491 = vperm.xlu0 %1490, %v1466
        %v1492 = vpop.permute.xlu0 %1491
        %1493 = vset.pattern.permute.xlu0 0
        %1494 = vperm.xlu0 %1493, %v1467
        %v1495 = vpop.permute.xlu0 %1494
        %1496 = vset.pattern.permute.xlu0 0
        %1497 = vperm.xlu0 %1496, %v1468
        %v1498 = vpop.permute.xlu0 %1497
        %1499 = vset.pattern.permute.xlu0 0
        %1500 = vperm.xlu0 %1499, %v1469
        %v1501 = vpop.permute.xlu0 %1500
        %1502 = vset.pattern.permute.xlu0 0
        %1503 = vperm.xlu0 %1502, %v1470
        %v1504 = vpop.permute.xlu0 %1503
        %1505 = vset.pattern.permute.xlu0 0
        %1506 = vperm.xlu0 %1505, %v1471
        %v1507 = vpop.permute.xlu0 %1506
        %1508 = vset.pattern.permute.xlu0 0
        %1509 = vperm.xlu0 %1508, %v1472
        %v1510 = vpop.permute.xlu0 %1509
        %1511 = vset.pattern.permute.xlu0 0
        %1512 = vperm.xlu0 %1511, %v1473
        %v1513 = vpop.permute.xlu0 %1512
        %1514 = vset.pattern.permute.xlu0 0
        %1515 = vperm.xlu0 %1514, %v1474
        %v1516 = vpop.permute.xlu0 %1515
        %1517 = vset.pattern.permute.xlu0 0
        %1518 = vperm.xlu0 %1517, %v1475
        %v1519 = vpop.permute.xlu0 %1518
        %1520 = vset.pattern.permute.xlu0 0
        %1521 = vperm.xlu0 %1520, %v1476
        %v1522 = vpop.permute.xlu0 %1521
        %1523 = vset.pattern.permute.xlu0 0
        %1524 = vperm.xlu0 %1523, %v1477
        %v1525 = vpop.permute.xlu0 %1524
        %vm1526 = vcmp.eq.s32.totalorder %v1444, %v1480
        %vm1527 = vcmp.eq.s32.totalorder %v1445, %v1480
        %vm1528 = vcmp.eq.s32.totalorder %v1444, %v1483
        %vm1529 = vcmp.eq.s32.totalorder %v1445, %v1483
        %vm1530 = vcmp.eq.s32.totalorder %v1444, %v1486
        %vm1531 = vcmp.eq.s32.totalorder %v1445, %v1486
        %vm1532 = vcmp.eq.s32.totalorder %v1444, %v1489
        %vm1533 = vcmp.eq.s32.totalorder %v1445, %v1489
        %vm1534 = vcmp.eq.s32.totalorder %v1444, %v1492
        %vm1535 = vcmp.eq.s32.totalorder %v1445, %v1492
        %vm1536 = vcmp.eq.s32.totalorder %v1444, %v1495
        %vm1537 = vcmp.eq.s32.totalorder %v1445, %v1495
        %vm1538 = vcmp.eq.s32.totalorder %v1444, %v1498
        %vm1539 = vcmp.eq.s32.totalorder %v1445, %v1498
        %vm1540 = vcmp.eq.s32.totalorder %v1444, %v1501
        %vm1541 = vcmp.eq.s32.totalorder %v1445, %v1501
        %vm1542 = vcmp.eq.s32.totalorder %v1444, %v1504
        %vm1543 = vcmp.eq.s32.totalorder %v1445, %v1504
        %vm1544 = vcmp.eq.s32.totalorder %v1444, %v1507
        %vm1545 = vcmp.eq.s32.totalorder %v1445, %v1507
        %vm1546 = vcmp.eq.s32.totalorder %v1444, %v1510
        %vm1547 = vcmp.eq.s32.totalorder %v1445, %v1510
        %vm1548 = vcmp.eq.s32.totalorder %v1444, %v1513
        %vm1549 = vcmp.eq.s32.totalorder %v1445, %v1513
        %vm1550 = vcmp.eq.s32.totalorder %v1444, %v1516
        %vm1551 = vcmp.eq.s32.totalorder %v1445, %v1516
        %vm1552 = vcmp.eq.s32.totalorder %v1444, %v1519
        %vm1553 = vcmp.eq.s32.totalorder %v1445, %v1519
        %vm1554 = vcmp.eq.s32.totalorder %v1444, %v1522
        %vm1555 = vcmp.eq.s32.totalorder %v1445, %v1522
        %vm1556 = vcmp.eq.s32.totalorder %v1444, %v1525
        %vm1557 = vcmp.eq.s32.totalorder %v1445, %v1525
        %v1558 = vsel %vm1526, %v918, 0.0
        %v1559 = vsel %vm1527, %v967, 0.0
        %v1560 = vsel %vm1528, %v920, 0.0
        %v1561 = vsel %vm1529, %v969, 0.0
        %v1562 = vsel %vm1530, %v923, 0.0
        %v1563 = vsel %vm1531, %v972, 0.0
        %v1564 = vsel %vm1532, %v925, 0.0
        %v1565 = vsel %vm1533, %v974, 0.0
        %v1566 = vsel %vm1534, %v928, 0.0
        %v1567 = vsel %vm1535, %v977, 0.0
        %v1568 = vsel %vm1536, %v930, 0.0
        %v1569 = vsel %vm1537, %v979, 0.0
        %v1570 = vsel %vm1538, %v933, 0.0
        %v1571 = vsel %vm1539, %v982, 0.0
        %v1572 = vsel %vm1540, %v935, 0.0
        %v1573 = vsel %vm1541, %v984, 0.0
        %v1574 = vsel %vm1542, %v938, 0.0
        %v1575 = vsel %vm1543, %v987, 0.0
        %v1576 = vsel %vm1544, %v940, 0.0
        %v1577 = vsel %vm1545, %v989, 0.0
        %v1578 = vsel %vm1546, %v943, 0.0
        %v1579 = vsel %vm1547, %v992, 0.0
        %v1580 = vsel %vm1548, %v945, 0.0
        %v1581 = vsel %vm1549, %v994, 0.0
        %v1582 = vsel %vm1550, %v948, 0.0
        %v1583 = vsel %vm1551, %v997, 0.0
        %v1584 = vsel %vm1552, %v950, 0.0
        %v1585 = vsel %vm1553, %v999, 0.0
        %v1586 = vsel %vm1554, %v953, 0.0
        %v1587 = vsel %vm1555, %v1002, 0.0
        %v1588 = vsel %vm1556, %v955, 0.0
        %v1589 = vsel %vm1557, %v1004, 0.0
        %v1590 = vadd.f32 %v1558, %v1559
        %1591 = vadd.xlane.f32.xlu0 %v1590
        %v1592 = vpop.xlane.xlu0 %1591
        %v1593 = vadd.f32 %v1560, %v1561
        %1594 = vadd.xlane.f32.xlu0 %v1593
        %v1595 = vpop.xlane.xlu0 %1594
        %v1596 = vadd.f32 %v1562, %v1563
        %1597 = vadd.xlane.f32.xlu0 %v1596
        %v1598 = vpop.xlane.xlu0 %1597
        %v1599 = vadd.f32 %v1564, %v1565
        %1600 = vadd.xlane.f32.xlu0 %v1599
        %v1601 = vpop.xlane.xlu0 %1600
        %v1602 = vadd.f32 %v1566, %v1567
        %1603 = vadd.xlane.f32.xlu0 %v1602
        %v1604 = vpop.xlane.xlu0 %1603
        %v1605 = vadd.f32 %v1568, %v1569
        %1606 = vadd.xlane.f32.xlu0 %v1605
        %v1607 = vpop.xlane.xlu0 %1606
        %v1608 = vadd.f32 %v1570, %v1571
        %1609 = vadd.xlane.f32.xlu0 %v1608
        %v1610 = vpop.xlane.xlu0 %1609
        %v1611 = vadd.f32 %v1572, %v1573
        %1612 = vadd.xlane.f32.xlu0 %v1611
        %v1613 = vpop.xlane.xlu0 %1612
        %v1614 = vadd.f32 %v1574, %v1575
        %1615 = vadd.xlane.f32.xlu0 %v1614
        %v1616 = vpop.xlane.xlu0 %1615
        %v1617 = vadd.f32 %v1576, %v1577
        %1618 = vadd.xlane.f32.xlu0 %v1617
        %v1619 = vpop.xlane.xlu0 %1618
        %v1620 = vadd.f32 %v1578, %v1579
        %1621 = vadd.xlane.f32.xlu0 %v1620
        %v1622 = vpop.xlane.xlu0 %1621
        %v1623 = vadd.f32 %v1580, %v1581
        %1624 = vadd.xlane.f32.xlu0 %v1623
        %v1625 = vpop.xlane.xlu0 %1624
        %v1626 = vadd.f32 %v1582, %v1583
        %1627 = vadd.xlane.f32.xlu0 %v1626
        %v1628 = vpop.xlane.xlu0 %1627
        %v1629 = vadd.f32 %v1584, %v1585
        %1630 = vadd.xlane.f32.xlu0 %v1629
        %v1631 = vpop.xlane.xlu0 %1630
        %v1632 = vadd.f32 %v1586, %v1587
        %1633 = vadd.xlane.f32.xlu0 %v1632
        %v1634 = vpop.xlane.xlu0 %1633
        %v1635 = vadd.f32 %v1588, %v1589
        %1636 = vadd.xlane.f32.xlu0 %v1635
        %v1637 = vpop.xlane.xlu0 %1636
        %v1638 = vadd.f32 %v1446, %v1592
        %v1639 = vadd.f32 %v1447, %v1595
        %v1640 = vadd.f32 %v1448, %v1598
        %v1641 = vadd.f32 %v1449, %v1601
        %v1642 = vadd.f32 %v1450, %v1604
        %v1643 = vadd.f32 %v1451, %v1607
        %v1644 = vadd.f32 %v1452, %v1610
        %v1645 = vadd.f32 %v1453, %v1613
        %v1646 = vadd.f32 %v1454, %v1616
        %v1647 = vadd.f32 %v1455, %v1619
        %v1648 = vadd.f32 %v1456, %v1622
        %v1649 = vadd.f32 %v1457, %v1625
        %v1650 = vadd.f32 %v1458, %v1628
        %v1651 = vadd.f32 %v1459, %v1631
        %v1652 = vadd.f32 %v1460, %v1634
        %v1653 = vadd.f32 %v1461, %v1637
        %1654 = vst.msk [vmem:[#allocation5] sm:$0xff] %vm1406, %v1638
        %1655 = vst.msk [vmem:[#allocation5 + $0x8] sm:$0xff] %vm1406, %v1639
        %1656 = vst.msk [vmem:[#allocation5 + $0x10] sm:$0xff] %vm1406, %v1640
        %1657 = vst.msk [vmem:[#allocation5 + $0x18] sm:$0xff] %vm1406, %v1641
        %1658 = vst.msk [vmem:[#allocation5 + $0x20] sm:$0xff] %vm1406, %v1642
        %1659 = vst.msk [vmem:[#allocation5 + $0x28] sm:$0xff] %vm1406, %v1643
        %1660 = vst.msk [vmem:[#allocation5 + $0x30] sm:$0xff] %vm1406, %v1644
        %1661 = vst.msk [vmem:[#allocation5 + $0x38] sm:$0xff] %vm1406, %v1645
        %1662 = vst.msk [vmem:[#allocation5 + $0x40] sm:$0xff] %vm1406, %v1646
        %1663 = vst.msk [vmem:[#allocation5 + $0x48] sm:$0xff] %vm1406, %v1647
        %1664 = vst.msk [vmem:[#allocation5 + $0x50] sm:$0xff] %vm1406, %v1648
        %1665 = vst.msk [vmem:[#allocation5 + $0x58] sm:$0xff] %vm1406, %v1649
        %1666 = vst.msk [vmem:[#allocation5 + $0x60] sm:$0xff] %vm1406, %v1650
        %1667 = vst.msk [vmem:[#allocation5 + $0x68] sm:$0xff] %vm1406, %v1651
        %1668 = vst.msk [vmem:[#allocation5 + $0x70] sm:$0xff] %vm1406, %v1652
        %1669 = vst.msk [vmem:[#allocation5 + $0x78] sm:$0xff] %vm1406, %v1653
        %p1670 = scmp.eq.s32.totalorder %s23, 1
        // Predicated region
        $region91: #{trf_lm_trainer_forward.1} parent=81 // pred_check
          %p1671 = pneg %p1670
        $region92: #{trf_lm_trainer_forward.1} parent=81 // pred_check_branch
          %1673 = sbr.rel (%p1671) target = $region94
        $region93: #{trf_lm_trainer_forward.1} parent=81 // pred_region
          %v1674 = vld [vmem:[#allocation3] sm:$0xff]
          %v1675 = vld [vmem:[#allocation3 + $0x8] sm:$0xff]
          %v1676 = vld [vmem:[#allocation3 + $0x10] sm:$0xff]
          %v1677 = vld [vmem:[#allocation3 + $0x18] sm:$0xff]
          %v1678 = vld [vmem:[#allocation3 + $0x20] sm:$0xff]
          %v1679 = vld [vmem:[#allocation3 + $0x28] sm:$0xff]
          %v1680 = vld [vmem:[#allocation3 + $0x30] sm:$0xff]
          %v1681 = vld [vmem:[#allocation3 + $0x38] sm:$0xff]
          %v1682 = vld [vmem:[#allocation3 + $0x40] sm:$0xff]
          %v1683 = vld [vmem:[#allocation3 + $0x48] sm:$0xff]
          %v1684 = vld [vmem:[#allocation3 + $0x50] sm:$0xff]
          %v1685 = vld [vmem:[#allocation3 + $0x58] sm:$0xff]
          %v1686 = vld [vmem:[#allocation3 + $0x60] sm:$0xff]
          %v1687 = vld [vmem:[#allocation3 + $0x68] sm:$0xff]
          %v1688 = vld [vmem:[#allocation3 + $0x70] sm:$0xff]
          %v1689 = vld [vmem:[#allocation3 + $0x78] sm:$0xff]
          %v1690 = vld [vmem:[#allocation4] sm:$0xff]
          %v1691 = vld [vmem:[#allocation4 + $0x8] sm:$0xff]
          %v1692 = vld [vmem:[#allocation4 + $0x10] sm:$0xff]
          %v1693 = vld [vmem:[#allocation4 + $0x18] sm:$0xff]
          %v1694 = vld [vmem:[#allocation4 + $0x20] sm:$0xff]
          %v1695 = vld [vmem:[#allocation4 + $0x28] sm:$0xff]
          %v1696 = vld [vmem:[#allocation4 + $0x30] sm:$0xff]
          %v1697 = vld [vmem:[#allocation4 + $0x38] sm:$0xff]
          %v1698 = vld [vmem:[#allocation4 + $0x40] sm:$0xff]
          %v1699 = vld [vmem:[#allocation4 + $0x48] sm:$0xff]
          %v1700 = vld [vmem:[#allocation4 + $0x50] sm:$0xff]
          %v1701 = vld [vmem:[#allocation4 + $0x58] sm:$0xff]
          %v1702 = vld [vmem:[#allocation4 + $0x60] sm:$0xff]
          %v1703 = vld [vmem:[#allocation4 + $0x68] sm:$0xff]
          %v1704 = vld [vmem:[#allocation4 + $0x70] sm:$0xff]
          %v1705 = vld [vmem:[#allocation4 + $0x78] sm:$0xff]
          %v1706 = vlog2.pop %v1690
          %v1707 = vmul.f32 %v1706, 0.6931472
          %v1708 = vlog2.pop %v1691
          %v1709 = vmul.f32 %v1708, 0.6931472
          %v1710 = vlog2.pop %v1692
          %v1711 = vmul.f32 %v1710, 0.6931472
          %v1712 = vlog2.pop %v1693
          %v1713 = vmul.f32 %v1712, 0.6931472
          %v1714 = vlog2.pop %v1694
          %v1715 = vmul.f32 %v1714, 0.6931472
          %v1716 = vlog2.pop %v1695
          %v1717 = vmul.f32 %v1716, 0.6931472
          %v1718 = vlog2.pop %v1696
          %v1719 = vmul.f32 %v1718, 0.6931472
          %v1720 = vlog2.pop %v1697
          %v1721 = vmul.f32 %v1720, 0.6931472
          %v1722 = vlog2.pop %v1698
          %v1723 = vmul.f32 %v1722, 0.6931472
          %v1724 = vlog2.pop %v1699
          %v1725 = vmul.f32 %v1724, 0.6931472
          %v1726 = vlog2.pop %v1700
          %v1727 = vmul.f32 %v1726, 0.6931472
          %v1728 = vlog2.pop %v1701
          %v1729 = vmul.f32 %v1728, 0.6931472
          %v1730 = vlog2.pop %v1702
          %v1731 = vmul.f32 %v1730, 0.6931472
          %v1732 = vlog2.pop %v1703
          %v1733 = vmul.f32 %v1732, 0.6931472
          %v1734 = vlog2.pop %v1704
          %v1735 = vmul.f32 %v1734, 0.6931472
          %v1736 = vlog2.pop %v1705
          %v1737 = vmul.f32 %v1736, 0.6931472
          %v1738 = vadd.f32 %v1674, %v1707
          %v1739 = vadd.f32 %v1675, %v1709
          %v1740 = vadd.f32 %v1676, %v1711
          %v1741 = vadd.f32 %v1677, %v1713
          %v1742 = vadd.f32 %v1678, %v1715
          %v1743 = vadd.f32 %v1679, %v1717
          %v1744 = vadd.f32 %v1680, %v1719
          %v1745 = vadd.f32 %v1681, %v1721
          %v1746 = vadd.f32 %v1682, %v1723
          %v1747 = vadd.f32 %v1683, %v1725
          %v1748 = vadd.f32 %v1684, %v1727
          %v1749 = vadd.f32 %v1685, %v1729
          %v1750 = vadd.f32 %v1686, %v1731
          %v1751 = vadd.f32 %v1687, %v1733
          %v1752 = vadd.f32 %v1688, %v1735
          %v1753 = vadd.f32 %v1689, %v1737
          %v1754 = vld [vmem:[#allocation5] sm:$0xff]
          %v1755 = vld [vmem:[#allocation5 + $0x8] sm:$0xff]
          %v1756 = vld [vmem:[#allocation5 + $0x10] sm:$0xff]
          %v1757 = vld [vmem:[#allocation5 + $0x18] sm:$0xff]
          %v1758 = vld [vmem:[#allocation5 + $0x20] sm:$0xff]
          %v1759 = vld [vmem:[#allocation5 + $0x28] sm:$0xff]
          %v1760 = vld [vmem:[#allocation5 + $0x30] sm:$0xff]
          %v1761 = vld [vmem:[#allocation5 + $0x38] sm:$0xff]
          %v1762 = vld [vmem:[#allocation5 + $0x40] sm:$0xff]
          %v1763 = vld [vmem:[#allocation5 + $0x48] sm:$0xff]
          %v1764 = vld [vmem:[#allocation5 + $0x50] sm:$0xff]
          %v1765 = vld [vmem:[#allocation5 + $0x58] sm:$0xff]
          %v1766 = vld [vmem:[#allocation5 + $0x60] sm:$0xff]
          %v1767 = vld [vmem:[#allocation5 + $0x68] sm:$0xff]
          %v1768 = vld [vmem:[#allocation5 + $0x70] sm:$0xff]
          %v1769 = vld [vmem:[#allocation5 + $0x78] sm:$0xff]
          %v1770 = vsub.f32 %v1738, %v1754
          %v1771 = vsub.f32 %v1739, %v1755
          %v1772 = vsub.f32 %v1740, %v1756
          %v1773 = vsub.f32 %v1741, %v1757
          %v1774 = vsub.f32 %v1742, %v1758
          %v1775 = vsub.f32 %v1743, %v1759
          %v1776 = vsub.f32 %v1744, %v1760
          %v1777 = vsub.f32 %v1745, %v1761
          %v1778 = vsub.f32 %v1746, %v1762
          %v1779 = vsub.f32 %v1747, %v1763
          %v1780 = vsub.f32 %v1748, %v1764
          %v1781 = vsub.f32 %v1749, %v1765
          %v1782 = vsub.f32 %v1750, %v1766
          %v1783 = vsub.f32 %v1751, %v1767
          %v1784 = vsub.f32 %v1752, %v1768
          %v1785 = vsub.f32 %v1753, %v1769
          %v1786 = vld [vmem:[%s466] sm:$0xff]
          %v1787 = vld [vmem:[%s466 + $0x8] sm:$0xff]
          %v1788 = vld [vmem:[%s466 + $0x10] sm:$0xff]
          %v1789 = vld [vmem:[%s466 + $0x18] sm:$0xff]
          %v1790 = vld [vmem:[%s466 + $0x20] sm:$0xff]
          %v1791 = vld [vmem:[%s466 + $0x28] sm:$0xff]
          %v1792 = vld [vmem:[%s466 + $0x30] sm:$0xff]
          %v1793 = vld [vmem:[%s466 + $0x38] sm:$0xff]
          %v1794 = vld [vmem:[%s466 + $0x40] sm:$0xff]
          %v1795 = vld [vmem:[%s466 + $0x48] sm:$0xff]
          %v1796 = vld [vmem:[%s466 + $0x50] sm:$0xff]
          %v1797 = vld [vmem:[%s466 + $0x58] sm:$0xff]
          %v1798 = vld [vmem:[%s466 + $0x60] sm:$0xff]
          %v1799 = vld [vmem:[%s466 + $0x68] sm:$0xff]
          %v1800 = vld [vmem:[%s466 + $0x70] sm:$0xff]
          %v1801 = vld [vmem:[%s466 + $0x78] sm:$0xff]
          %v1802 = vmul.f32 %v1770, %v1786
          %v1803 = vmul.f32 %v1771, %v1787
          %v1804 = vmul.f32 %v1772, %v1788
          %v1805 = vmul.f32 %v1773, %v1789
          %v1806 = vmul.f32 %v1774, %v1790
          %v1807 = vmul.f32 %v1775, %v1791
          %v1808 = vmul.f32 %v1776, %v1792
          %v1809 = vmul.f32 %v1777, %v1793
          %v1810 = vmul.f32 %v1778, %v1794
          %v1811 = vmul.f32 %v1779, %v1795
          %v1812 = vmul.f32 %v1780, %v1796
          %v1813 = vmul.f32 %v1781, %v1797
          %v1814 = vmul.f32 %v1782, %v1798
          %v1815 = vmul.f32 %v1783, %v1799
          %v1816 = vmul.f32 %v1784, %v1800
          %v1817 = vmul.f32 %v1785, %v1801
          %1818 = vst.msk [vmem:[%s472] sm:$0xff] %vm1406, %v1802
          %1819 = vst.msk [vmem:[%s472 + $0x8] sm:$0xff] %vm1406, %v1803
          %1820 = vst.msk [vmem:[%s472 + $0x10] sm:$0xff] %vm1406, %v1804
          %1821 = vst.msk [vmem:[%s472 + $0x18] sm:$0xff] %vm1406, %v1805
          %1822 = vst.msk [vmem:[%s472 + $0x20] sm:$0xff] %vm1406, %v1806
          %1823 = vst.msk [vmem:[%s472 + $0x28] sm:$0xff] %vm1406, %v1807
          %1824 = vst.msk [vmem:[%s472 + $0x30] sm:$0xff] %vm1406, %v1808
          %1825 = vst.msk [vmem:[%s472 + $0x38] sm:$0xff] %vm1406, %v1809
          %1826 = vst.msk [vmem:[%s472 + $0x40] sm:$0xff] %vm1406, %v1810
          %1827 = vst.msk [vmem:[%s472 + $0x48] sm:$0xff] %vm1406, %v1811
          %1828 = vst.msk [vmem:[%s472 + $0x50] sm:$0xff] %vm1406, %v1812
          %1829 = vst.msk [vmem:[%s472 + $0x58] sm:$0xff] %vm1406, %v1813
          %1830 = vst.msk [vmem:[%s472 + $0x60] sm:$0xff] %vm1406, %v1814
          %1831 = vst.msk [vmem:[%s472 + $0x68] sm:$0xff] %vm1406, %v1815
          %1832 = vst.msk [vmem:[%s472 + $0x70] sm:$0xff] %vm1406, %v1816
          %1833 = vst.msk [vmem:[%s472 + $0x78] sm:$0xff] %vm1406, %v1817
        $region94: #{trf_lm_trainer_forward.1} parent=81 // pred_fallthru
          _
        %s1834 = smul.u32 16, %s22
        %p1835 = scmp.lt.s32.totalorder %s1834, 31
        %s1836 = scalar_select %p1835, %s1834, 31
        %s1837 = smul.addr %s1836, 8
        %s1838 = scalar_lea.vmem %s7, %s1837
        // Predicated region
        $region95: #{trf_lm_trainer_forward.1} parent=81 // pred_check
          %p1839 = pneg %p220
        $region96: #{trf_lm_trainer_forward.1} parent=81 // pred_check_branch
          %1841 = sbr.rel (%p1839) target = $region98
        $region97: #{trf_lm_trainer_forward.1} parent=81 // pred_region
          %s1842 = smul.u32 16, %s22
        $region98: #{trf_lm_trainer_forward.1} parent=81 // pred_fallthru
          _
      $region82: #{trf_lm_trainer_forward.1} parent=5 // pred_fallthru
        _
      %p1843 = scmp.le.s32.totalorder 2, %s13
      // Predicated region
      $region99: #{trf_lm_trainer_forward.1} parent=5 // pred_check
        %p1844 = pneg %p1843
      $region100: #{trf_lm_trainer_forward.1} parent=5 // pred_check_branch
        %1846 = sbr.rel (%p1844) target = $region102
      $region101: #{trf_lm_trainer_forward.1} parent=5 // pred_region
        %s1847 = ssub.s32 %s13, 2
        // Predicated region
        $region103: #{trf_lm_trainer_forward.1} parent=101 // pred_check
          %p1848 = pneg %p226
        $region104: #{trf_lm_trainer_forward.1} parent=101 // pred_check_branch
          %1850 = sbr.rel (%p1848) target = $region106
        $region105: #{trf_lm_trainer_forward.1} parent=101 // pred_region
          %s1851 = smul.u32 16, %s24
          %p1852 = scmp.lt.s32.totalorder %s1851, 31
          %s1853 = scalar_select %p1852, %s1851, 31
          %s1854 = smul.addr %s1853, 8
          %s1855 = scalar_lea.vmem %s7, %s1854
        $region106: #{trf_lm_trainer_forward.1} parent=101 // pred_fallthru
          _
      $region102: #{trf_lm_trainer_forward.1} parent=5 // pred_fallthru
        _
    $region6: #{trf_lm_trainer_forward.1} parent=1 // loop_footer
      %s17 = sadd.s32 1, %s13
    $region7: #{trf_lm_trainer_forward.1} parent=1 // loop_footer_branch
      %12 = sbr.rel target = $region3
    $region8: #{trf_lm_trainer_forward.1} parent=1 // loop_exit
      _

</llo_original>
